<compile_context>
chip_gen: v7x
topology: tpu7x:2x2x1
jax: 0.10.0
libtpu: 0.0.40
codegen_flags: <defaults>
</compile_context>

<pallas_src>
import numpy as np
import jax
import jax.numpy as jnp
from jax.experimental import pallas as pl
from jax.experimental.pallas import tpu as pltpu

# ---------------------------------------------------------------------------
# Problem sizes (derived from the Board the same way the torch module does).
# ---------------------------------------------------------------------------
BOARD_POSITION = [3, 7, 5, 1]
NO_OF_PILES = len(BOARD_POSITION)             # 4
MAX_STONES = max(BOARD_POSITION)              # 7
BITS = int(np.log2(MAX_STONES) + 1)           # 3
F = BITS * NO_OF_PILES                        # 12  (MLP input dim)
H = 64                                        # hidden dim
OUT = MAX_STONES * NO_OF_PILES                # 28  (MLP output dim)

P_PAD = 8                                     # piles lane pad (f32 sublane tile for sel dot)
F_PAD = 16                                    # feature pad (bf16 sublane tile)
OUT_PAD = 128                                 # lane-dense output stores
TB_MAX = 2048                                 # max batch tile (rows per grid step)


def _batch_tiling(b):
    """Pick (tile, num_steps): biggest tile <= TB_MAX, but keep >= 2 grid steps
    when b >= 32 so both v7x TensorCores get work.  Tile is a multiple of 16
    (bf16 output sublane tile)."""
    half = -(-b // 2)
    tb = min(TB_MAX, max(16, -(-half // 16) * 16))
    nb = -(-b // tb)
    return tb, nb


# ---------------------------------------------------------------------------
# Pallas kernel: in-kernel bit decode + 3-layer MLP. One batch tile per step;
# weights and decode tables stay resident in VMEM (constant index_maps).
# ---------------------------------------------------------------------------
def nim_mlp_kernel(piles_ref, sel_ref, mask_ref,
                   w1_ref, b1_ref, w2_ref, b2_ref, w3_ref, b3_ref, o_ref):
    # --- binary decode (LSB first): feature k = bit (k % BITS) of pile (k//BITS)
    # x_sel[:, k] = piles[:, k // BITS] via a tiny exact f32 selector matmul,
    # then one masked-AND extracts the bit.  Padded lanes (>= F) decode to 0.
    piles_f = piles_ref[...].astype(jnp.float32)               # (tb, P_PAD)
    x_sel = jnp.dot(piles_f, sel_ref[...],
                    preferred_element_type=jnp.float32)        # (tb, F_PAD) exact
    bits = (x_sel.astype(jnp.int32) & mask_ref[...]) > 0       # (tb, F_PAD) bool
    feat = bits.astype(jnp.float32).astype(jnp.bfloat16)       # {0,1} exact

    # --- 3-layer MLP: bf16 MXU operands, f32 accumulation; bias/ReLU in f32
    # (v5e has no bf16 VPU, so elementwise stays f32).
    h1 = jnp.dot(feat, w1_ref[...], preferred_element_type=jnp.float32)
    h1 = jnp.maximum(h1 + b1_ref[...], 0.0)                    # (tb, H)

    h2 = jnp.dot(h1.astype(jnp.bfloat16), w2_ref[...],
                 preferred_element_type=jnp.float32)
    h2 = jnp.maximum(h2 + b2_ref[...], 0.0)                    # (tb, H)

    o = jnp.dot(h2.astype(jnp.bfloat16), w3_ref[...],
                preferred_element_type=jnp.float32)
    # bf16 store halves output HBM traffic; lanes stay 128-dense (unmasked vst).
    o_ref[...] = (o + b3_ref[...]).astype(o_ref.dtype)         # (tb, OUT_PAD)


# ---------------------------------------------------------------------------
# One-time parameter packing (padding / dtype casts are NOT in the call path).
# Weights are (in_features, out_features) = torch.nn.Linear.weight.T.
# ---------------------------------------------------------------------------
def prepare_params(params):
    w1, b1, w2, b2, w3, b3 = params

    # decode tables (resident in VMEM across grid steps)
    sel = np.zeros((P_PAD, F_PAD), np.float32)     # sel[p, k] = 1 iff k//BITS == p
    mask = np.zeros((1, F_PAD), np.int32)          # mask[0, k] = 2^(k % BITS)
    for k in range(F):
        sel[k // BITS, k] = 1.0
        mask[0, k] = 1 << (k % BITS)
    selp = jnp.asarray(sel)
    maskp = jnp.asarray(mask)

    w1p = jnp.zeros((F_PAD, H), jnp.bfloat16).at[:F, :].set(w1.astype(jnp.bfloat16))
    w2p = w2.astype(jnp.bfloat16)                                     # (H, H)
    w3p = jnp.zeros((H, OUT_PAD), jnp.bfloat16).at[:, :OUT].set(w3.astype(jnp.bfloat16))
    b1p = b1.reshape(1, H).astype(jnp.float32)
    b2p = b2.reshape(1, H).astype(jnp.float32)
    b3p = jnp.zeros((1, OUT_PAD), jnp.float32).at[0, :OUT].set(b3)
    return (selp, maskp, w1p, b1p, w2p, b2p, w3p, b3p)


# ---------------------------------------------------------------------------
# Hot-path entry point: returns the padded (B_pad, OUT_PAD) bf16 logits so no
# extra HBM copy (column slice) is issued after the kernel. Consumers should
# view [:, :OUT] lazily / fuse it downstream.
# ---------------------------------------------------------------------------
@jax.jit
def nim_mlp_forward_padded(piles, prepared):
    selp, maskp, w1p, b1p, w2p, b2p, w3p, b3p = prepared
    b_orig = piles.shape[0]
    piles = piles.astype(jnp.int32)

    tb, nb = _batch_tiling(b_orig)                       # static under jit
    b_pad = nb * tb
    piles = jnp.pad(piles, ((0, b_pad - b_orig), (0, P_PAD - NO_OF_PILES)))

    flops = 2 * b_pad * (P_PAD * F_PAD + F_PAD * H + H * H + H * OUT_PAD)
    bytes_accessed = (piles.size * 4
                      + (w1p.size + w2p.size + w3p.size) * 2
                      + (selp.size + b1p.size + b2p.size + b3p.size + maskp.size) * 4
                      + b_pad * OUT_PAD * 2)
    cost = pl.CostEstimate(flops=flops, transcendentals=0,
                           bytes_accessed=bytes_accessed)

    # VMEM at TB=2048: ~1.2 MiB double-buffered I/O + ~2.5 MiB intermediates,
    # well under even v5e's 16 MiB default scoped limit -> no vmem_limit_bytes
    # override needed. Revisit if TB_MAX is pushed past ~4096.
    return pl.pallas_call(
        nim_mlp_kernel,
        out_shape=jax.ShapeDtypeStruct((b_pad, OUT_PAD), jnp.bfloat16),
        grid=(nb,),
        in_specs=[
            pl.BlockSpec((tb, P_PAD), lambda i: (i, 0)),         # batch-tiled piles
            pl.BlockSpec((P_PAD, F_PAD), lambda i: (0, 0)),      # decode selector
            pl.BlockSpec((1, F_PAD), lambda i: (0, 0)),          # bit mask
            pl.BlockSpec((F_PAD, H), lambda i: (0, 0)),          # W1 resident
            pl.BlockSpec((1, H), lambda i: (0, 0)),              # b1 resident
            pl.BlockSpec((H, H), lambda i: (0, 0)),              # W2 resident
            pl.BlockSpec((1, H), lambda i: (0, 0)),              # b2 resident
            pl.BlockSpec((H, OUT_PAD), lambda i: (0, 0)),        # W3 resident
            pl.BlockSpec((1, OUT_PAD), lambda i: (0, 0)),        # b3 resident
        ],
        out_specs=pl.BlockSpec((tb, OUT_PAD), lambda i: (i, 0)),
        compiler_params=pltpu.CompilerParams(
            dimension_semantics=("parallel",)),                  # v7x: 2 TCs split batch
        cost_estimate=cost,
    )(piles, selp, maskp, w1p, b1p, w2p, b2p, w3p, b3p)


def nim_mlp_forward(piles, prepared):
    """Compatibility wrapper matching the torch module signature: (B, OUT) f32.
    Not the hot path -- the trailing slice/cast issues an extra XLA copy."""
    out_pad = nim_mlp_forward_padded(piles, prepared)
    return out_pad[:piles.shape[0], :OUT].astype(jnp.float32)


# ---------------------------------------------------------------------------
# Deterministic parameter init (torch.nn.Linear-style uniform(-1/sqrt(fan_in))).
# ---------------------------------------------------------------------------
def init_params(key):
    ks = jax.random.split(key, 6)

    def lin(kw, kb, fan_in, fan_out):
        bound = 1.0 / np.sqrt(fan_in)
        w = jax.random.uniform(kw, (fan_in, fan_out), jnp.float32, -bound, bound)
        b = jax.random.uniform(kb, (fan_out,), jnp.float32, -bound, bound)
        return w, b

    w1, b1 = lin(ks[0], ks[1], F, H)
    w2, b2 = lin(ks[2], ks[3], H, H)
    w3, b3 = lin(ks[4], ks[5], H, OUT)
    return (w1, b1, w2, b2, w3, b3)


# ---------------------------------------------------------------------------
# Pure-JAX references replicating the torch forward (for verification).
# ---------------------------------------------------------------------------
def _decode(x_int):
    mask = (2 ** jnp.arange(BITS)).astype(jnp.int32)                  # [1, 2, 4]
    bits = ((x_int[..., None].astype(jnp.int32) & mask) != 0).astype(jnp.float32)
    return bits.reshape(x_int.shape[0], F)                            # (B, F)


def reference_forward(x_int, params):                                 # exact f32
    w1, b1, w2, b2, w3, b3 = params
    feat = _decode(x_int)
    h1 = jnp.maximum(feat @ w1 + b1, 0.0)
    h2 = jnp.maximum(h1 @ w2 + b2, 0.0)
    return h2 @ w3 + b3


def reference_forward_bf16(x_int, params):                            # bf16-MXU consistent
    w1, b1, w2, b2, w3, b3 = params
    feat = _decode(x_int)

    def mm(a, w):
        return jnp.dot(a.astype(jnp.bfloat16), w.astype(jnp.bfloat16),
                       preferred_element_type=jnp.float32)

    h1 = jnp.maximum(mm(feat, w1) + b1, 0.0)
    h2 = jnp.maximum(mm(h1, w2) + b2, 0.0)
    return mm(h2, w3) + b3


if __name__ == "__main__":
    key = jax.random.PRNGKey(0)
    kp, kx1, kx2 = jax.random.split(key, 3)

    params = init_params(kp)
    prepared = prepare_params(params)        # one-time packing, outside call path

    # --- batched call (the intended usage: many boards per launch) ---------
    # B=1024 -> tile=512, grid=(2,) so both v7x TensorCores get one step each.
    B1 = 1024
    x1 = jax.random.randint(kx1, (B1, NO_OF_PILES), 0, MAX_STONES + 1,
                            dtype=jnp.int32)
    out1_pad = jax.block_until_ready(nim_mlp_forward_padded(x1, prepared))
    assert out1_pad.shape == (1024, OUT_PAD) and out1_pad.dtype == jnp.bfloat16

    out1 = np.asarray(out1_pad[:B1, :OUT], dtype=np.float32)
    np.testing.assert_allclose(out1,
                               np.asarray(reference_forward_bf16(x1, params)),
                               rtol=1e-2, atol=2e-2)   # only final-store bf16 rounding
    np.testing.assert_allclose(out1,
                               np.asarray(reference_forward(x1, params)),
                               rtol=6e-2, atol=6e-2)   # bf16 MXU vs f32 reference

    # --- small ragged batch (exercises the batch/lane padding path) --------
    B2 = 5
    x2 = jax.random.randint(kx2, (B2, NO_OF_PILES), 0, MAX_STONES + 1,
                            dtype=jnp.int32)
    out2 = jax.block_until_ready(nim_mlp_forward(x2, prepared))
    assert out2.shape == (B2, OUT), out2.shape
    np.testing.assert_allclose(np.asarray(out2),
                               np.asarray(reference_forward(x2, params)),
                               rtol=6e-2, atol=6e-2)

    print("KERNEL_OK")
</pallas_src>

<mosaic_0001>
module attributes {stable_mosaic.version = 11 : i64} {
  func.func @nim_mlp_kernel(%arg0: i32, %arg1: memref<512x8xi32, #tpu.memory_space<vmem>>, %arg2: memref<8x16xf32, #tpu.memory_space<vmem>>, %arg3: memref<1x16xi32, #tpu.memory_space<vmem>>, %arg4: memref<16x64xbf16, #tpu.memory_space<vmem>>, %arg5: memref<1x64xf32, #tpu.memory_space<vmem>>, %arg6: memref<64x64xbf16, #tpu.memory_space<vmem>>, %arg7: memref<1x64xf32, #tpu.memory_space<vmem>>, %arg8: memref<64x128xbf16, #tpu.memory_space<vmem>>, %arg9: memref<1x128xf32, #tpu.memory_space<vmem>>, %arg10: memref<512x128xbf16, #tpu.memory_space<vmem>>) attributes {dimension_semantics = [#tpu.dimension_semantics<parallel>], iteration_bounds = array<i64: 2>, scalar_prefetch = 0 : i64, scratch_operands = 0 : i64, tpu.core_type = #tpu.core_type<tc>, window_params = [{transform_indices = @transform_0, window_bounds = array<i64: 512, 8>}, {pipeline_mode = #tpu.pipeline_mode<synchronous>, transform_indices = @transform_1, window_bounds = array<i64: 8, 16>}, {pipeline_mode = #tpu.pipeline_mode<synchronous>, transform_indices = @transform_2, window_bounds = array<i64: 1, 16>}, {pipeline_mode = #tpu.pipeline_mode<synchronous>, transform_indices = @transform_3, window_bounds = array<i64: 16, 64>}, {pipeline_mode = #tpu.pipeline_mode<synchronous>, transform_indices = @transform_4, window_bounds = array<i64: 1, 64>}, {pipeline_mode = #tpu.pipeline_mode<synchronous>, transform_indices = @transform_5, window_bounds = array<i64: 64, 64>}, {pipeline_mode = #tpu.pipeline_mode<synchronous>, transform_indices = @transform_6, window_bounds = array<i64: 1, 64>}, {pipeline_mode = #tpu.pipeline_mode<synchronous>, transform_indices = @transform_7, window_bounds = array<i64: 64, 128>}, {pipeline_mode = #tpu.pipeline_mode<synchronous>, transform_indices = @transform_8, window_bounds = array<i64: 1, 128>}, {transform_indices = @transform_9, window_bounds = array<i64: 512, 128>}]} {
    %c0 = arith.constant 0 : index
    %c0_0 = arith.constant 0 : index
    %0 = vector.load %arg1[%c0, %c0_0] : memref<512x8xi32, #tpu.memory_space<vmem>>, vector<512x8xi32>
    %1 = arith.sitofp %0 : vector<512x8xi32> to vector<512x8xf32>
    %c0_1 = arith.constant 0 : index
    %c0_2 = arith.constant 0 : index
    %2 = vector.load %arg2[%c0_1, %c0_2] : memref<8x16xf32, #tpu.memory_space<vmem>>, vector<8x16xf32>
    %cst = arith.constant dense<0.000000e+00> : vector<512x16xf32>
    %3 = tpu.matmul %1, %2, %cst {dimension_numbers = #tpu.dot_dimension_numbers<[1], [0], [0], [1], [0, 0, 1, 1], [], []>} : vector<512x8xf32>, vector<8x16xf32>, vector<512x16xf32> -> vector<512x16xf32>
    %4 = arith.fptosi %3 : vector<512x16xf32> to vector<512x16xi32>
    %c0_3 = arith.constant 0 : index
    %c0_4 = arith.constant 0 : index
    %5 = vector.load %arg3[%c0_3, %c0_4] : memref<1x16xi32, #tpu.memory_space<vmem>>, vector<1x16xi32>
    %6 = vector.broadcast %5 : vector<1x16xi32> to vector<512x16xi32>
    %7 = arith.andi %4, %6 : vector<512x16xi32>
    %c0_i32 = arith.constant 0 : i32
    %8 = vector.broadcast %c0_i32 : i32 to vector<512x16xi32>
    %9 = arith.cmpi sgt, %7, %8 : vector<512x16xi32>
    %10 = arith.extui %9 : vector<512x16xi1> to vector<512x16xi32>
    %11 = arith.sitofp %10 : vector<512x16xi32> to vector<512x16xf32>
    %12 = arith.truncf %11 : vector<512x16xf32> to vector<512x16xbf16>
    %c0_5 = arith.constant 0 : index
    %c0_6 = arith.constant 0 : index
    %13 = vector.load %arg4[%c0_5, %c0_6] : memref<16x64xbf16, #tpu.memory_space<vmem>>, vector<16x64xbf16>
    %cst_7 = arith.constant dense<0.000000e+00> : vector<512x64xf32>
    %14 = tpu.matmul %12, %13, %cst_7 {dimension_numbers = #tpu.dot_dimension_numbers<[1], [0], [0], [1], [0, 0, 1, 1], [], []>} : vector<512x16xbf16>, vector<16x64xbf16>, vector<512x64xf32> -> vector<512x64xf32>
    %c0_8 = arith.constant 0 : index
    %c0_9 = arith.constant 0 : index
    %15 = vector.load %arg5[%c0_8, %c0_9] : memref<1x64xf32, #tpu.memory_space<vmem>>, vector<1x64xf32>
    %16 = vector.broadcast %15 : vector<1x64xf32> to vector<512x64xf32>
    %17 = arith.addf %14, %16 : vector<512x64xf32>
    %cst_10 = arith.constant 0.000000e+00 : f32
    %18 = vector.broadcast %cst_10 : f32 to vector<512x64xf32>
    %19 = arith.maximumf %17, %18 : vector<512x64xf32>
    %20 = arith.truncf %19 : vector<512x64xf32> to vector<512x64xbf16>
    %c0_11 = arith.constant 0 : index
    %c0_12 = arith.constant 0 : index
    %21 = vector.load %arg6[%c0_11, %c0_12] : memref<64x64xbf16, #tpu.memory_space<vmem>>, vector<64x64xbf16>
    %cst_13 = arith.constant dense<0.000000e+00> : vector<512x64xf32>
    %22 = tpu.matmul %20, %21, %cst_13 {dimension_numbers = #tpu.dot_dimension_numbers<[1], [0], [0], [1], [0, 0, 1, 1], [], []>} : vector<512x64xbf16>, vector<64x64xbf16>, vector<512x64xf32> -> vector<512x64xf32>
    %c0_14 = arith.constant 0 : index
    %c0_15 = arith.constant 0 : index
    %23 = vector.load %arg7[%c0_14, %c0_15] : memref<1x64xf32, #tpu.memory_space<vmem>>, vector<1x64xf32>
    %24 = vector.broadcast %23 : vector<1x64xf32> to vector<512x64xf32>
    %25 = arith.addf %22, %24 : vector<512x64xf32>
    %cst_16 = arith.constant 0.000000e+00 : f32
    %26 = vector.broadcast %cst_16 : f32 to vector<512x64xf32>
    %27 = arith.maximumf %25, %26 : vector<512x64xf32>
    %28 = arith.truncf %27 : vector<512x64xf32> to vector<512x64xbf16>
    %c0_17 = arith.constant 0 : index
    %c0_18 = arith.constant 0 : index
    %29 = vector.load %arg8[%c0_17, %c0_18] : memref<64x128xbf16, #tpu.memory_space<vmem>>, vector<64x128xbf16>
    %cst_19 = arith.constant dense<0.000000e+00> : vector<512x128xf32>
    %30 = tpu.matmul %28, %29, %cst_19 {dimension_numbers = #tpu.dot_dimension_numbers<[1], [0], [0], [1], [0, 0, 1, 1], [], []>} : vector<512x64xbf16>, vector<64x128xbf16>, vector<512x128xf32> -> vector<512x128xf32>
    %c0_20 = arith.constant 0 : index
    %c0_21 = arith.constant 0 : index
    %31 = vector.load %arg9[%c0_20, %c0_21] : memref<1x128xf32, #tpu.memory_space<vmem>>, vector<1x128xf32>
    %32 = vector.broadcast %31 : vector<1x128xf32> to vector<512x128xf32>
    %33 = arith.addf %30, %32 : vector<512x128xf32>
    %34 = arith.truncf %33 : vector<512x128xf32> to vector<512x128xbf16>
    %c0_22 = arith.constant 0 : index
    %c0_23 = arith.constant 0 : index
    %35 = vector.load %arg10[%c0_22, %c0_23] : memref<512x128xbf16, #tpu.memory_space<vmem>>, vector<512x128xbf16>
    tpu.vector_store %arg10[%c0_22, %c0_23], %34 {strides = array<i32>} : memref<512x128xbf16, #tpu.memory_space<vmem>>, vector<512x128xbf16>,
    return
  }
  func.func @transform_0(%arg0: i32) -> (i32, i32) {
    %c0_i32 = arith.constant 0 : i32
    %c0_i32_0 = arith.constant 0 : i32
    return %arg0, %c0_i32 : i32, i32
  }
  func.func @transform_1(%arg0: i32) -> (i32, i32) {
    %c0_i32 = arith.constant 0 : i32
    %c0_i32_0 = arith.constant 0 : i32
    %c0_i32_1 = arith.constant 0 : i32
    return %c0_i32, %c0_i32_0 : i32, i32
  }
  func.func @transform_2(%arg0: i32) -> (i32, i32) {
    %c0_i32 = arith.constant 0 : i32
    %c0_i32_0 = arith.constant 0 : i32
    %c0_i32_1 = arith.constant 0 : i32
    return %c0_i32, %c0_i32_0 : i32, i32
  }
  func.func @transform_3(%arg0: i32) -> (i32, i32) {
    %c0_i32 = arith.constant 0 : i32
    %c0_i32_0 = arith.constant 0 : i32
    %c0_i32_1 = arith.constant 0 : i32
    return %c0_i32, %c0_i32_0 : i32, i32
  }
  func.func @transform_4(%arg0: i32) -> (i32, i32) {
    %c0_i32 = arith.constant 0 : i32
    %c0_i32_0 = arith.constant 0 : i32
    %c0_i32_1 = arith.constant 0 : i32
    return %c0_i32, %c0_i32_0 : i32, i32
  }
  func.func @transform_5(%arg0: i32) -> (i32, i32) {
    %c0_i32 = arith.constant 0 : i32
    %c0_i32_0 = arith.constant 0 : i32
    %c0_i32_1 = arith.constant 0 : i32
    return %c0_i32, %c0_i32_0 : i32, i32
  }
  func.func @transform_6(%arg0: i32) -> (i32, i32) {
    %c0_i32 = arith.constant 0 : i32
    %c0_i32_0 = arith.constant 0 : i32
    %c0_i32_1 = arith.constant 0 : i32
    return %c0_i32, %c0_i32_0 : i32, i32
  }
  func.func @transform_7(%arg0: i32) -> (i32, i32) {
    %c0_i32 = arith.constant 0 : i32
    %c0_i32_0 = arith.constant 0 : i32
    %c0_i32_1 = arith.constant 0 : i32
    return %c0_i32, %c0_i32_0 : i32, i32
  }
  func.func @transform_8(%arg0: i32) -> (i32, i32) {
    %c0_i32 = arith.constant 0 : i32
    %c0_i32_0 = arith.constant 0 : i32
    %c0_i32_1 = arith.constant 0 : i32
    return %c0_i32, %c0_i32_0 : i32, i32
  }
  func.func @transform_9(%arg0: i32) -> (i32, i32) {
    %c0_i32 = arith.constant 0 : i32
    %c0_i32_0 = arith.constant 0 : i32
    return %arg0, %c0_i32 : i32, i32
  }
}

</mosaic_0001>

<llo_original>
// kernel: nim_mlp_forward_padded.1
$region0: #{nim_mlp_forward_padded.1}
  #allocation0 [shape = 'u32[]', space=smem, size = 0x4, offset = 0x4, fixed_abs, tag = 'smem constant byte address 0x4 - core index']
  #allocation1 [shape = 'u32[144,128]{1,0:T(1,128)}', space=vmem, size = 0x12000, scoped, tag = 'internal scratch']
  %s0 = inlined_call_operand.vmem [shape: s32[1024,8], index: 0, kind: input, shape index: {}]
  %s1 = inlined_call_operand.vmem [shape: f32[8,16], index: 1, kind: input, shape index: {}]
  %s2 = inlined_call_operand.vmem [shape: s32[1,16], index: 2, kind: input, shape index: {}]
  %s3 = inlined_call_operand.vmem [shape: bf16[16,64], index: 3, kind: input, shape index: {}]
  %s4 = inlined_call_operand.vmem [shape: f32[1,64], index: 4, kind: input, shape index: {}]
  %s5 = inlined_call_operand.vmem [shape: bf16[64,64], index: 5, kind: input, shape index: {}]
  %s6 = inlined_call_operand.vmem [shape: f32[1,64], index: 6, kind: input, shape index: {}]
  %s7 = inlined_call_operand.vmem [shape: bf16[64,128], index: 7, kind: input, shape index: {}]
  %s8 = inlined_call_operand.vmem [shape: f32[1,128], index: 8, kind: input, shape index: {}]
  %s9 = inlined_call_operand.hbm [shape: bf16[1024,128], index: 9, kind: output, shape index: {}]
  %s10 = sld [smem:[#allocation0]]
  $region69: #{nim_mlp_forward_padded.1} parent=0
    _
  %s12 = ssub.s32 1, %s10
  %s13 = scalar_select 0, %s12, %s10
  $region1: #{nim_mlp_forward_padded.1} parent=0
    #allocation2 [shape = 'u8[262144]{0}', space=vmem, size = 0x40000, scoped, tag = 'output window, operand 0']
    #allocation3 [shape = 's32[2]{0}', space=sflag, size = 0x8, scoped, tag = 'scoped memory for nim_mlp_forward_padded.1']
    %14 = vsyncpa [#allocation3], 0
    %s15 = scalar_lea.sflag [#allocation3], 1
    %16 = vsyncpa %s15, 0
    loop: start=0, step=1, limit=4
    $region2: #{nim_mlp_forward_padded.1} parent=1 // loop_pre_header
      _
    $region3: #{nim_mlp_forward_padded.1} parent=1 // loop_header
      %s18 = sphi 0, %s22
      %p19 = scmp.ge.s32.totalorder %s18, 4
      %s28 = sphi 0, %s30
      %s31 = sphi 0, %s28
      %s32 = sphi 0, %s31
      %s48 = sphi 0, %s32
      %s52 = sphi 0, %s52
      %s54 = sphi 0, %s52
      %s55 = sphi 0, %s54
      %s69 = sphi 0, %s55
      %s73 = sphi 0, %s73
      %s75 = sphi 0, %s73
      %s76 = sphi 0, %s75
      %s90 = sphi 0, %s76
      %s94 = sphi 0, %s94
      %s96 = sphi 0, %s94
      %s97 = sphi 0, %s96
      %s111 = sphi 0, %s97
      %s115 = sphi 0, %s115
      %s117 = sphi 0, %s115
      %s118 = sphi 0, %s117
      %s132 = sphi 0, %s118
      %s136 = sphi 0, %s136
      %s138 = sphi 0, %s136
      %s139 = sphi 0, %s138
      %s153 = sphi 0, %s139
      %s157 = sphi 0, %s157
      %s159 = sphi 0, %s157
      %s160 = sphi 0, %s159
      %s174 = sphi 0, %s160
      %s178 = sphi 0, %s178
      %s180 = sphi 0, %s178
      %s181 = sphi 0, %s180
      %s195 = sphi 0, %s181
      %s199 = sphi 0, %s199
      %s201 = sphi 0, %s199
      %s202 = sphi 0, %s201
      %s216 = sphi 0, %s202
      %s222 = sphi 0, %s224
      %s225 = sphi 0, %s222
      %s226 = sphi 0, %s225
      %s242 = sphi 0, %s226
    $region4: #{nim_mlp_forward_padded.1} parent=1 // loop_header_branch
      %21 = sbr.rel (%p19) target = $region8
    $region5: #{nim_mlp_forward_padded.1} parent=1 // loop_body
      %s23 = ssub.s32 %s18, 1
      %s24 = ssub.s32 %s18, 2
      %s25 = sadd.s32 %s18, 1
      %s26 = ssub.s32 %s18, %s25
      %p27 = scmp.eq.s32.totalorder %s26, 0
      %s29 = sadd.s32 %s28, 1
      %s30 = scalar_select %p27, %s28, %s29
      %p33 = pneg %p27
      %p34 = scmp.eq.s32.totalorder %s18, 1
      %p35 = por %p33, %p34
      %p36 = scmp.ne.s32.totalorder %s28, %s31
      %p37 = scmp.eq.s32.totalorder %s18, 0
      %p38 = por %p36, %p37
      %p39 = scmp.ne.s32.totalorder %s28, %s31
      %p40 = scmp.eq.s32.totalorder %s23, 1
      %p41 = por %p39, %p40
      %p42 = scmp.ne.s32.totalorder %s31, %s32
      %p43 = scmp.eq.s32.totalorder %s23, 0
      %p44 = por %p42, %p43
      %p45 = scmp.ne.s32.totalorder %s31, %s32
      %p46 = scmp.eq.s32.totalorder %s24, 1
      %p47 = por %p45, %p46
      %p49 = scmp.ne.s32.totalorder %s32, %s48
      %p50 = scmp.eq.s32.totalorder %s24, 0
      %p51 = por %p49, %p50
      %s53 = sadd.s32 %s52, 1
      %p56 = scmp.eq.s32.totalorder %s18, 1
      %p57 = scmp.ne.s32.totalorder %s52, %s54
      %p58 = scmp.eq.s32.totalorder %s18, 0
      %p59 = por %p57, %p58
      %p60 = scmp.ne.s32.totalorder %s52, %s54
      %p61 = scmp.eq.s32.totalorder %s23, 1
      %p62 = por %p60, %p61
      %p63 = scmp.ne.s32.totalorder %s54, %s55
      %p64 = scmp.eq.s32.totalorder %s23, 0
      %p65 = por %p63, %p64
      %p66 = scmp.ne.s32.totalorder %s54, %s55
      %p67 = scmp.eq.s32.totalorder %s24, 1
      %p68 = por %p66, %p67
      %p70 = scmp.ne.s32.totalorder %s55, %s69
      %p71 = scmp.eq.s32.totalorder %s24, 0
      %p72 = por %p70, %p71
      %s74 = sadd.s32 %s73, 1
      %p77 = scmp.eq.s32.totalorder %s18, 1
      %p78 = scmp.ne.s32.totalorder %s73, %s75
      %p79 = scmp.eq.s32.totalorder %s18, 0
      %p80 = por %p78, %p79
      %p81 = scmp.ne.s32.totalorder %s73, %s75
      %p82 = scmp.eq.s32.totalorder %s23, 1
      %p83 = por %p81, %p82
      %p84 = scmp.ne.s32.totalorder %s75, %s76
      %p85 = scmp.eq.s32.totalorder %s23, 0
      %p86 = por %p84, %p85
      %p87 = scmp.ne.s32.totalorder %s75, %s76
      %p88 = scmp.eq.s32.totalorder %s24, 1
      %p89 = por %p87, %p88
      %p91 = scmp.ne.s32.totalorder %s76, %s90
      %p92 = scmp.eq.s32.totalorder %s24, 0
      %p93 = por %p91, %p92
      %s95 = sadd.s32 %s94, 1
      %p98 = scmp.eq.s32.totalorder %s18, 1
      %p99 = scmp.ne.s32.totalorder %s94, %s96
      %p100 = scmp.eq.s32.totalorder %s18, 0
      %p101 = por %p99, %p100
      %p102 = scmp.ne.s32.totalorder %s94, %s96
      %p103 = scmp.eq.s32.totalorder %s23, 1
      %p104 = por %p102, %p103
      %p105 = scmp.ne.s32.totalorder %s96, %s97
      %p106 = scmp.eq.s32.totalorder %s23, 0
      %p107 = por %p105, %p106
      %p108 = scmp.ne.s32.totalorder %s96, %s97
      %p109 = scmp.eq.s32.totalorder %s24, 1
      %p110 = por %p108, %p109
      %p112 = scmp.ne.s32.totalorder %s97, %s111
      %p113 = scmp.eq.s32.totalorder %s24, 0
      %p114 = por %p112, %p113
      %s116 = sadd.s32 %s115, 1
      %p119 = scmp.eq.s32.totalorder %s18, 1
      %p120 = scmp.ne.s32.totalorder %s115, %s117
      %p121 = scmp.eq.s32.totalorder %s18, 0
      %p122 = por %p120, %p121
      %p123 = scmp.ne.s32.totalorder %s115, %s117
      %p124 = scmp.eq.s32.totalorder %s23, 1
      %p125 = por %p123, %p124
      %p126 = scmp.ne.s32.totalorder %s117, %s118
      %p127 = scmp.eq.s32.totalorder %s23, 0
      %p128 = por %p126, %p127
      %p129 = scmp.ne.s32.totalorder %s117, %s118
      %p130 = scmp.eq.s32.totalorder %s24, 1
      %p131 = por %p129, %p130
      %p133 = scmp.ne.s32.totalorder %s118, %s132
      %p134 = scmp.eq.s32.totalorder %s24, 0
      %p135 = por %p133, %p134
      %s137 = sadd.s32 %s136, 1
      %p140 = scmp.eq.s32.totalorder %s18, 1
      %p141 = scmp.ne.s32.totalorder %s136, %s138
      %p142 = scmp.eq.s32.totalorder %s18, 0
      %p143 = por %p141, %p142
      %p144 = scmp.ne.s32.totalorder %s136, %s138
      %p145 = scmp.eq.s32.totalorder %s23, 1
      %p146 = por %p144, %p145
      %p147 = scmp.ne.s32.totalorder %s138, %s139
      %p148 = scmp.eq.s32.totalorder %s23, 0
      %p149 = por %p147, %p148
      %p150 = scmp.ne.s32.totalorder %s138, %s139
      %p151 = scmp.eq.s32.totalorder %s24, 1
      %p152 = por %p150, %p151
      %p154 = scmp.ne.s32.totalorder %s139, %s153
      %p155 = scmp.eq.s32.totalorder %s24, 0
      %p156 = por %p154, %p155
      %s158 = sadd.s32 %s157, 1
      %p161 = scmp.eq.s32.totalorder %s18, 1
      %p162 = scmp.ne.s32.totalorder %s157, %s159
      %p163 = scmp.eq.s32.totalorder %s18, 0
      %p164 = por %p162, %p163
      %p165 = scmp.ne.s32.totalorder %s157, %s159
      %p166 = scmp.eq.s32.totalorder %s23, 1
      %p167 = por %p165, %p166
      %p168 = scmp.ne.s32.totalorder %s159, %s160
      %p169 = scmp.eq.s32.totalorder %s23, 0
      %p170 = por %p168, %p169
      %p171 = scmp.ne.s32.totalorder %s159, %s160
      %p172 = scmp.eq.s32.totalorder %s24, 1
      %p173 = por %p171, %p172
      %p175 = scmp.ne.s32.totalorder %s160, %s174
      %p176 = scmp.eq.s32.totalorder %s24, 0
      %p177 = por %p175, %p176
      %s179 = sadd.s32 %s178, 1
      %p182 = scmp.eq.s32.totalorder %s18, 1
      %p183 = scmp.ne.s32.totalorder %s178, %s180
      %p184 = scmp.eq.s32.totalorder %s18, 0
      %p185 = por %p183, %p184
      %p186 = scmp.ne.s32.totalorder %s178, %s180
      %p187 = scmp.eq.s32.totalorder %s23, 1
      %p188 = por %p186, %p187
      %p189 = scmp.ne.s32.totalorder %s180, %s181
      %p190 = scmp.eq.s32.totalorder %s23, 0
      %p191 = por %p189, %p190
      %p192 = scmp.ne.s32.totalorder %s180, %s181
      %p193 = scmp.eq.s32.totalorder %s24, 1
      %p194 = por %p192, %p193
      %p196 = scmp.ne.s32.totalorder %s181, %s195
      %p197 = scmp.eq.s32.totalorder %s24, 0
      %p198 = por %p196, %p197
      %s200 = sadd.s32 %s199, 1
      %p203 = scmp.eq.s32.totalorder %s18, 1
      %p204 = scmp.ne.s32.totalorder %s199, %s201
      %p205 = scmp.eq.s32.totalorder %s18, 0
      %p206 = por %p204, %p205
      %p207 = scmp.ne.s32.totalorder %s199, %s201
      %p208 = scmp.eq.s32.totalorder %s23, 1
      %p209 = por %p207, %p208
      %p210 = scmp.ne.s32.totalorder %s201, %s202
      %p211 = scmp.eq.s32.totalorder %s23, 0
      %p212 = por %p210, %p211
      %p213 = scmp.ne.s32.totalorder %s201, %s202
      %p214 = scmp.eq.s32.totalorder %s24, 1
      %p215 = por %p213, %p214
      %p217 = scmp.ne.s32.totalorder %s202, %s216
      %p218 = scmp.eq.s32.totalorder %s24, 0
      %p219 = por %p217, %p218
      %s220 = ssub.s32 %s18, %s25
      %p221 = scmp.eq.s32.totalorder %s220, 0
      %s223 = sadd.s32 %s222, 1
      %s224 = scalar_select %p221, %s222, %s223
      %p227 = pneg %p221
      %p228 = scmp.eq.s32.totalorder %s18, 1
      %p229 = por %p227, %p228
      %p230 = scmp.ne.s32.totalorder %s222, %s225
      %p231 = scmp.eq.s32.totalorder %s18, 0
      %p232 = por %p230, %p231
      %p233 = scmp.ne.s32.totalorder %s222, %s225
      %p234 = scmp.eq.s32.totalorder %s23, 1
      %p235 = por %p233, %p234
      %p236 = scmp.ne.s32.totalorder %s225, %s226
      %p237 = scmp.eq.s32.totalorder %s23, 0
      %p238 = por %p236, %p237
      %p239 = scmp.ne.s32.totalorder %s225, %s226
      %p240 = scmp.eq.s32.totalorder %s24, 1
      %p241 = por %p239, %p240
      %p243 = scmp.ne.s32.totalorder %s226, %s242
      %p244 = scmp.eq.s32.totalorder %s24, 0
      %p245 = por %p243, %p244
      %p246 = scmp.le.s32.totalorder 1, %s18
      %p247 = scmp.lt.s32.totalorder %s18, 3
      %p248 = pnand %p246, %p247
      %p249 = pneg %p248
      // Predicated region
      $region9: #{nim_mlp_forward_padded.1} parent=5 // pred_check
        _
      $region10: #{nim_mlp_forward_padded.1} parent=5 // pred_check_branch
        %251 = sbr.rel (%p248) target = $region12
      $region11: #{nim_mlp_forward_padded.1} parent=5 // pred_region
        %s252 = ssub.s32 %s18, 1
        // Predicated region
        $region13: #{nim_mlp_forward_padded.1} parent=11 // pred_check
          %p253 = pneg %p65
        $region14: #{nim_mlp_forward_padded.1} parent=11 // pred_check_branch
          %255 = sbr.rel (%p253) target = $region16
        $region15: #{nim_mlp_forward_padded.1} parent=11 // pred_region
          _
        $region16: #{nim_mlp_forward_padded.1} parent=11 // pred_fallthru
          _
        // Predicated region
        $region17: #{nim_mlp_forward_padded.1} parent=11 // pred_check
          %p256 = pneg %p86
        $region18: #{nim_mlp_forward_padded.1} parent=11 // pred_check_branch
          %258 = sbr.rel (%p256) target = $region20
        $region19: #{nim_mlp_forward_padded.1} parent=11 // pred_region
          _
        $region20: #{nim_mlp_forward_padded.1} parent=11 // pred_fallthru
          _
        // Predicated region
        $region21: #{nim_mlp_forward_padded.1} parent=11 // pred_check
          %p259 = pneg %p107
        $region22: #{nim_mlp_forward_padded.1} parent=11 // pred_check_branch
          %261 = sbr.rel (%p259) target = $region24
        $region23: #{nim_mlp_forward_padded.1} parent=11 // pred_region
          _
        $region24: #{nim_mlp_forward_padded.1} parent=11 // pred_fallthru
          _
        // Predicated region
        $region25: #{nim_mlp_forward_padded.1} parent=11 // pred_check
          %p262 = pneg %p128
        $region26: #{nim_mlp_forward_padded.1} parent=11 // pred_check_branch
          %264 = sbr.rel (%p262) target = $region28
        $region27: #{nim_mlp_forward_padded.1} parent=11 // pred_region
          _
        $region28: #{nim_mlp_forward_padded.1} parent=11 // pred_fallthru
          _
        // Predicated region
        $region29: #{nim_mlp_forward_padded.1} parent=11 // pred_check
          %p265 = pneg %p149
        $region30: #{nim_mlp_forward_padded.1} parent=11 // pred_check_branch
          %267 = sbr.rel (%p265) target = $region32
        $region31: #{nim_mlp_forward_padded.1} parent=11 // pred_region
          _
        $region32: #{nim_mlp_forward_padded.1} parent=11 // pred_fallthru
          _
        // Predicated region
        $region33: #{nim_mlp_forward_padded.1} parent=11 // pred_check
          %p268 = pneg %p170
        $region34: #{nim_mlp_forward_padded.1} parent=11 // pred_check_branch
          %270 = sbr.rel (%p268) target = $region36
        $region35: #{nim_mlp_forward_padded.1} parent=11 // pred_region
          _
        $region36: #{nim_mlp_forward_padded.1} parent=11 // pred_fallthru
          _
        // Predicated region
        $region37: #{nim_mlp_forward_padded.1} parent=11 // pred_check
          %p271 = pneg %p191
        $region38: #{nim_mlp_forward_padded.1} parent=11 // pred_check_branch
          %273 = sbr.rel (%p271) target = $region40
        $region39: #{nim_mlp_forward_padded.1} parent=11 // pred_region
          _
        $region40: #{nim_mlp_forward_padded.1} parent=11 // pred_fallthru
          _
        // Predicated region
        $region41: #{nim_mlp_forward_padded.1} parent=11 // pred_check
          %p274 = pneg %p212
        $region42: #{nim_mlp_forward_padded.1} parent=11 // pred_check_branch
          %276 = sbr.rel (%p274) target = $region44
        $region43: #{nim_mlp_forward_padded.1} parent=11 // pred_region
          _
        $region44: #{nim_mlp_forward_padded.1} parent=11 // pred_fallthru
          _
      $region12: #{nim_mlp_forward_padded.1} parent=5 // pred_fallthru
        _
      %p277 = scmp.lt.s32.totalorder %s18, 2
      // Predicated region
      $region45: #{nim_mlp_forward_padded.1} parent=5 // pred_check
        %p278 = pneg %p277
      $region46: #{nim_mlp_forward_padded.1} parent=5 // pred_check_branch
        %280 = sbr.rel (%p278) target = $region48
      $region47: #{nim_mlp_forward_padded.1} parent=5 // pred_region
        // Predicated region
        $region49: #{nim_mlp_forward_padded.1} parent=47 // pred_check
          %p281 = pneg %p38
        $region50: #{nim_mlp_forward_padded.1} parent=47 // pred_check_branch
          %283 = sbr.rel (%p281) target = $region52
        $region51: #{nim_mlp_forward_padded.1} parent=47 // pred_region
          %s284 = smul.u32 64, %s18
          %p285 = scmp.lt.s32.totalorder %s284, 127
          %s286 = scalar_select %p285, %s284, 127
          %s287 = smul.addr %s286, 8
          %s288 = scalar_lea.vmem %s0, %s287
          %s289 = smul.u32 64, %s18
        $region52: #{nim_mlp_forward_padded.1} parent=47 // pred_fallthru
          _
      $region48: #{nim_mlp_forward_padded.1} parent=5 // pred_fallthru
        _
      %p290 = scmp.le.s32.totalorder 1, %s18
      %p291 = scmp.lt.s32.totalorder %s18, 3
      %p292 = pnand %p290, %p291
      %p293 = pneg %p292
      // Predicated region
      $region53: #{nim_mlp_forward_padded.1} parent=5 // pred_check
        _
      $region54: #{nim_mlp_forward_padded.1} parent=5 // pred_check_branch
        %295 = sbr.rel (%p292) target = $region56
      $region55: #{nim_mlp_forward_padded.1} parent=5 // pred_region
        %s296 = ssub.s32 %s18, 1
        %s297 = smul.u32 64, %s23
        %p298 = scmp.lt.s32.totalorder %s297, 127
        %s299 = scalar_select %p298, %s297, 127
        %s300 = smul.addr %s299, 8
        %s301 = scalar_lea.vmem %s0, %s300
        %p302 = pneg %p44
        %p303 = pneg %p41
        %p304 = pneg %p65
        %p305 = pneg %p62
        %p306 = pneg %p86
        %p307 = pneg %p83
        %p308 = pneg %p107
        %p309 = pneg %p104
        %p310 = pneg %p128
        %p311 = pneg %p125
        %p312 = pneg %p149
        %p313 = pneg %p146
        %p314 = pneg %p170
        %p315 = pneg %p167
        %p316 = pneg %p191
        %p317 = pneg %p188
        %p318 = pneg %p212
        %p319 = pneg %p209
        %p320 = pneg %p238
        %p321 = pneg %p235
        %s322 = sand.u32 %s225, 1
        %s323 = scalar_lea.sflag [#allocation3], %s322
        %s324 = sand.u32 %s225, 1
        %s325 = smul.addr %s324, 256
        %s326 = scalar_lea.vmem [#allocation2], %s325
        %s327 = smul.u32 64, %s23
        %p328 = scmp.lt.s32.totalorder %s327, 127
        %s329 = scalar_select %p328, %s327, 127
        %s330 = smul.addr %s329, 8
        %s331 = scalar_lea.vmem %s0, %s330
        %s332 = smul.u32 64, %s23
        %s333 = smul.u32 64, %s23
        %v335 = vld [vmem:[%s331] sm:$0xff]
        %v336 = vld [vmem:[%s331 + $0x8] sm:$0xff]
        %v337 = vld [vmem:[%s331 + $0x10] sm:$0xff]
        %v338 = vld [vmem:[%s331 + $0x18] sm:$0xff]
        %v339 = vld [vmem:[%s331 + $0x20] sm:$0xff]
        %v340 = vld [vmem:[%s331 + $0x28] sm:$0xff]
        %v341 = vld [vmem:[%s331 + $0x30] sm:$0xff]
        %v342 = vld [vmem:[%s331 + $0x38] sm:$0xff]
        %v343 = vld [vmem:[%s331 + $0x40] sm:$0xff]
        %v344 = vld [vmem:[%s331 + $0x48] sm:$0xff]
        %v345 = vld [vmem:[%s331 + $0x50] sm:$0xff]
        %v346 = vld [vmem:[%s331 + $0x58] sm:$0xff]
        %v347 = vld [vmem:[%s331 + $0x60] sm:$0xff]
        %v348 = vld [vmem:[%s331 + $0x68] sm:$0xff]
        %v349 = vld [vmem:[%s331 + $0x70] sm:$0xff]
        %v350 = vld [vmem:[%s331 + $0x78] sm:$0xff]
        %v351 = vld [vmem:[%s331 + $0x80] sm:$0xff]
        %v352 = vld [vmem:[%s331 + $0x88] sm:$0xff]
        %v353 = vld [vmem:[%s331 + $0x90] sm:$0xff]
        %v354 = vld [vmem:[%s331 + $0x98] sm:$0xff]
        %v355 = vld [vmem:[%s331 + $0xa0] sm:$0xff]
        %v356 = vld [vmem:[%s331 + $0xa8] sm:$0xff]
        %v357 = vld [vmem:[%s331 + $0xb0] sm:$0xff]
        %v358 = vld [vmem:[%s331 + $0xb8] sm:$0xff]
        %v359 = vld [vmem:[%s331 + $0xc0] sm:$0xff]
        %v360 = vld [vmem:[%s331 + $0xc8] sm:$0xff]
        %v361 = vld [vmem:[%s331 + $0xd0] sm:$0xff]
        %v362 = vld [vmem:[%s331 + $0xd8] sm:$0xff]
        %v363 = vld [vmem:[%s331 + $0xe0] sm:$0xff]
        %v364 = vld [vmem:[%s331 + $0xe8] sm:$0xff]
        %v365 = vld [vmem:[%s331 + $0xf0] sm:$0xff]
        %v366 = vld [vmem:[%s331 + $0xf8] sm:$0xff]
        %v367 = vld [vmem:[%s331 + $0x100] sm:$0xff]
        %v368 = vld [vmem:[%s331 + $0x108] sm:$0xff]
        %v369 = vld [vmem:[%s331 + $0x110] sm:$0xff]
        %v370 = vld [vmem:[%s331 + $0x118] sm:$0xff]
        %v371 = vld [vmem:[%s331 + $0x120] sm:$0xff]
        %v372 = vld [vmem:[%s331 + $0x128] sm:$0xff]
        %v373 = vld [vmem:[%s331 + $0x130] sm:$0xff]
        %v374 = vld [vmem:[%s331 + $0x138] sm:$0xff]
        %v375 = vld [vmem:[%s331 + $0x140] sm:$0xff]
        %v376 = vld [vmem:[%s331 + $0x148] sm:$0xff]
        %v377 = vld [vmem:[%s331 + $0x150] sm:$0xff]
        %v378 = vld [vmem:[%s331 + $0x158] sm:$0xff]
        %v379 = vld [vmem:[%s331 + $0x160] sm:$0xff]
        %v380 = vld [vmem:[%s331 + $0x168] sm:$0xff]
        %v381 = vld [vmem:[%s331 + $0x170] sm:$0xff]
        %v382 = vld [vmem:[%s331 + $0x178] sm:$0xff]
        %v383 = vld [vmem:[%s331 + $0x180] sm:$0xff]
        %v384 = vld [vmem:[%s331 + $0x188] sm:$0xff]
        %v385 = vld [vmem:[%s331 + $0x190] sm:$0xff]
        %v386 = vld [vmem:[%s331 + $0x198] sm:$0xff]
        %v387 = vld [vmem:[%s331 + $0x1a0] sm:$0xff]
        %v388 = vld [vmem:[%s331 + $0x1a8] sm:$0xff]
        %v389 = vld [vmem:[%s331 + $0x1b0] sm:$0xff]
        %v390 = vld [vmem:[%s331 + $0x1b8] sm:$0xff]
        %v391 = vld [vmem:[%s331 + $0x1c0] sm:$0xff]
        %v392 = vld [vmem:[%s331 + $0x1c8] sm:$0xff]
        %v393 = vld [vmem:[%s331 + $0x1d0] sm:$0xff]
        %v394 = vld [vmem:[%s331 + $0x1d8] sm:$0xff]
        %v395 = vld [vmem:[%s331 + $0x1e0] sm:$0xff]
        %v396 = vld [vmem:[%s331 + $0x1e8] sm:$0xff]
        %v397 = vld [vmem:[%s331 + $0x1f0] sm:$0xff]
        %v398 = vld [vmem:[%s331 + $0x1f8] sm:$0xff]
        %v399 = vcvt.s32.f32 %v335
        %v400 = vcvt.s32.f32 %v336
        %v401 = vcvt.s32.f32 %v337
        %v402 = vcvt.s32.f32 %v338
        %v403 = vcvt.s32.f32 %v339
        %v404 = vcvt.s32.f32 %v340
        %v405 = vcvt.s32.f32 %v341
        %v406 = vcvt.s32.f32 %v342
        %v407 = vcvt.s32.f32 %v343
        %v408 = vcvt.s32.f32 %v344
        %v409 = vcvt.s32.f32 %v345
        %v410 = vcvt.s32.f32 %v346
        %v411 = vcvt.s32.f32 %v347
        %v412 = vcvt.s32.f32 %v348
        %v413 = vcvt.s32.f32 %v349
        %v414 = vcvt.s32.f32 %v350
        %v415 = vcvt.s32.f32 %v351
        %v416 = vcvt.s32.f32 %v352
        %v417 = vcvt.s32.f32 %v353
        %v418 = vcvt.s32.f32 %v354
        %v419 = vcvt.s32.f32 %v355
        %v420 = vcvt.s32.f32 %v356
        %v421 = vcvt.s32.f32 %v357
        %v422 = vcvt.s32.f32 %v358
        %v423 = vcvt.s32.f32 %v359
        %v424 = vcvt.s32.f32 %v360
        %v425 = vcvt.s32.f32 %v361
        %v426 = vcvt.s32.f32 %v362
        %v427 = vcvt.s32.f32 %v363
        %v428 = vcvt.s32.f32 %v364
        %v429 = vcvt.s32.f32 %v365
        %v430 = vcvt.s32.f32 %v366
        %v431 = vcvt.s32.f32 %v367
        %v432 = vcvt.s32.f32 %v368
        %v433 = vcvt.s32.f32 %v369
        %v434 = vcvt.s32.f32 %v370
        %v435 = vcvt.s32.f32 %v371
        %v436 = vcvt.s32.f32 %v372
        %v437 = vcvt.s32.f32 %v373
        %v438 = vcvt.s32.f32 %v374
        %v439 = vcvt.s32.f32 %v375
        %v440 = vcvt.s32.f32 %v376
        %v441 = vcvt.s32.f32 %v377
        %v442 = vcvt.s32.f32 %v378
        %v443 = vcvt.s32.f32 %v379
        %v444 = vcvt.s32.f32 %v380
        %v445 = vcvt.s32.f32 %v381
        %v446 = vcvt.s32.f32 %v382
        %v447 = vcvt.s32.f32 %v383
        %v448 = vcvt.s32.f32 %v384
        %v449 = vcvt.s32.f32 %v385
        %v450 = vcvt.s32.f32 %v386
        %v451 = vcvt.s32.f32 %v387
        %v452 = vcvt.s32.f32 %v388
        %v453 = vcvt.s32.f32 %v389
        %v454 = vcvt.s32.f32 %v390
        %v455 = vcvt.s32.f32 %v391
        %v456 = vcvt.s32.f32 %v392
        %v457 = vcvt.s32.f32 %v393
        %v458 = vcvt.s32.f32 %v394
        %v459 = vcvt.s32.f32 %v395
        %v460 = vcvt.s32.f32 %v396
        %v461 = vcvt.s32.f32 %v397
        %v462 = vcvt.s32.f32 %v398
        %v463 = vld [vmem:[%s1] sm:$0xff]
        %vm464 = vcmask 64512
        %v466 = vsel %vm464, %v399, 0
        %v469 = vsel %vm464, %v400, 0
        %v472 = vsel %vm464, %v401, 0
        %v475 = vsel %vm464, %v402, 0
        %v478 = vsel %vm464, %v403, 0
        %v481 = vsel %vm464, %v404, 0
        %v484 = vsel %vm464, %v405, 0
        %v487 = vsel %vm464, %v406, 0
        %v490 = vsel %vm464, %v407, 0
        %v493 = vsel %vm464, %v408, 0
        %v496 = vsel %vm464, %v409, 0
        %v499 = vsel %vm464, %v410, 0
        %v502 = vsel %vm464, %v411, 0
        %v505 = vsel %vm464, %v412, 0
        %v508 = vsel %vm464, %v413, 0
        %v511 = vsel %vm464, %v414, 0
        %v514 = vsel %vm464, %v415, 0
        %v517 = vsel %vm464, %v416, 0
        %v520 = vsel %vm464, %v417, 0
        %v523 = vsel %vm464, %v418, 0
        %v526 = vsel %vm464, %v419, 0
        %v529 = vsel %vm464, %v420, 0
        %v532 = vsel %vm464, %v421, 0
        %v535 = vsel %vm464, %v422, 0
        %v538 = vsel %vm464, %v423, 0
        %v541 = vsel %vm464, %v424, 0
        %v544 = vsel %vm464, %v425, 0
        %v547 = vsel %vm464, %v426, 0
        %v550 = vsel %vm464, %v427, 0
        %v553 = vsel %vm464, %v428, 0
        %v556 = vsel %vm464, %v429, 0
        %v559 = vsel %vm464, %v430, 0
        %v562 = vsel %vm464, %v431, 0
        %v565 = vsel %vm464, %v432, 0
        %v568 = vsel %vm464, %v433, 0
        %v571 = vsel %vm464, %v434, 0
        %v574 = vsel %vm464, %v435, 0
        %v577 = vsel %vm464, %v436, 0
        %v580 = vsel %vm464, %v437, 0
        %v583 = vsel %vm464, %v438, 0
        %v586 = vsel %vm464, %v439, 0
        %v589 = vsel %vm464, %v440, 0
        %v592 = vsel %vm464, %v441, 0
        %v595 = vsel %vm464, %v442, 0
        %v598 = vsel %vm464, %v443, 0
        %v601 = vsel %vm464, %v444, 0
        %v604 = vsel %vm464, %v445, 0
        %v607 = vsel %vm464, %v446, 0
        %v610 = vsel %vm464, %v447, 0
        %v613 = vsel %vm464, %v448, 0
        %v616 = vsel %vm464, %v449, 0
        %v619 = vsel %vm464, %v450, 0
        %v622 = vsel %vm464, %v451, 0
        %v625 = vsel %vm464, %v452, 0
        %v628 = vsel %vm464, %v453, 0
        %v631 = vsel %vm464, %v454, 0
        %v634 = vsel %vm464, %v455, 0
        %v637 = vsel %vm464, %v456, 0
        %v640 = vsel %vm464, %v457, 0
        %v643 = vsel %vm464, %v458, 0
        %v646 = vsel %vm464, %v459, 0
        %v649 = vsel %vm464, %v460, 0
        %v652 = vsel %vm464, %v461, 0
        %v655 = vsel %vm464, %v462, 0
        %657 = vmatprep.subr.mxu0 0.0
        %658 = vmatpush1.msra.mxu0 %v463
        %659 = vmatprep.subr.mxu0 0.0
        %660 = vmatpush1.msra.mxu0 0.0
        %661 = vmatprep.subr.mxu0 0.0
        %662 = vmatpush1.msra.mxu0 0.0
        %663 = vmatprep.subr.mxu0 0.0
        %664 = vmatpush1.msra.mxu0 0.0
        %665 = vmatprep.subr.mxu0 0.0
        %666 = vmatpush1.msra.mxu0 0.0
        %667 = vmatprep.subr.mxu0 0.0
        %668 = vmatpush1.msra.mxu0 0.0
        %669 = vmatprep.subr.mxu0 0.0
        %670 = vmatpush1.msra.mxu0 0.0
        %671 = vmatprep.subr.mxu0 0.0
        %672 = vmatpush1.msra.mxu0 0.0
        %673 = vmatprep.subr.mxu0 0.0
        %674 = vmatpush1.msra.mxu0 0.0
        %675 = vmatprep.subr.mxu0 0.0
        %676 = vmatpush1.msra.mxu0 0.0
        %677 = vmatprep.subr.mxu0 0.0
        %678 = vmatpush1.msra.mxu0 0.0
        %679 = vmatprep.subr.mxu0 0.0
        %680 = vmatpush1.msra.mxu0 0.0
        %681 = vmatprep.subr.mxu0 0.0
        %682 = vmatpush1.msra.mxu0 0.0
        %683 = vmatprep.subr.mxu0 0.0
        %684 = vmatpush1.msra.mxu0 0.0
        %685 = vmatprep.subr.mxu0 0.0
        %686 = vmatpush1.msra.mxu0 0.0
        %687 = vmatprep.subr.mxu0 0.0
        %688 = vmatpush1.msra.mxu0 0.0
        %689 = vmatprep.subr.mxu0 0.0
        %690 = vmatpush1.msra.mxu0 0.0
        %691 = vmatprep.subr.mxu0 0.0
        %692 = vmatpush1.msra.mxu0 0.0
        %693 = vmatprep.subr.mxu0 0.0
        %694 = vmatpush1.msra.mxu0 0.0
        %695 = vmatprep.subr.mxu0 0.0
        %696 = vmatpush1.msra.mxu0 0.0
        %697 = vmatprep.subr.mxu0 0.0
        %698 = vmatpush1.msra.mxu0 0.0
        %699 = vmatprep.subr.mxu0 0.0
        %700 = vmatpush1.msra.mxu0 0.0
        %701 = vmatprep.subr.mxu0 0.0
        %702 = vmatpush1.msra.mxu0 0.0
        %703 = vmatprep.subr.mxu0 0.0
        %704 = vmatpush1.msra.mxu0 0.0
        %705 = vmatprep.subr.mxu0 0.0
        %706 = vmatpush1.msra.mxu0 0.0
        %707 = vmatprep.subr.mxu0 0.0
        %708 = vmatpush1.msra.mxu0 0.0
        %709 = vmatprep.subr.mxu0 0.0
        %710 = vmatpush1.msra.mxu0 0.0
        %711 = vmatprep.subr.mxu0 0.0
        %712 = vmatpush1.msra.mxu0 0.0
        %713 = vmatprep.subr.mxu0 0.0
        %714 = vmatpush1.msra.mxu0 0.0
        %715 = vmatprep.subr.mxu0 0.0
        %716 = vmatpush1.msra.mxu0 0.0
        %717 = vmatprep.subr.mxu0 0.0
        %718 = vmatpush1.msra.mxu0 0.0
        %719 = vmatprep.subr.mxu0 0.0
        %720 = vmatpush1.msra.mxu0 0.0
        %721 = vmatprep.mubr.f32.mxu0 0.0
        %722 = vmatmul.mubr.f32.gmra.mrb[0].mxu0 %v466
        %v723 = vpop.f32.mrb[0].mxu0
        %v724 = vadd.f32 0.0, %v723
        %v725 = vpop.f32.mrb[0].mxu0
        %726 = vmatprep.mubr.f32.mxu0 0.0
        %727 = vmatmul.mubr.f32.gmra.mrb[0].mxu0 %v469
        %v728 = vpop.f32.mrb[0].mxu0
        %v729 = vadd.f32 0.0, %v728
        %v730 = vpop.f32.mrb[0].mxu0
        %731 = vmatprep.mubr.f32.mxu0 0.0
        %732 = vmatmul.mubr.f32.gmra.mrb[0].mxu0 %v472
        %v733 = vpop.f32.mrb[0].mxu0
        %v734 = vadd.f32 0.0, %v733
        %v735 = vpop.f32.mrb[0].mxu0
        %736 = vmatprep.mubr.f32.mxu0 0.0
        %737 = vmatmul.mubr.f32.gmra.mrb[0].mxu0 %v475
        %v738 = vpop.f32.mrb[0].mxu0
        %v739 = vadd.f32 0.0, %v738
        %v740 = vpop.f32.mrb[0].mxu0
        %741 = vmatprep.mubr.f32.mxu0 0.0
        %742 = vmatmul.mubr.f32.gmra.mrb[0].mxu0 %v478
        %v743 = vpop.f32.mrb[0].mxu0
        %v744 = vadd.f32 0.0, %v743
        %v745 = vpop.f32.mrb[0].mxu0
        %746 = vmatprep.mubr.f32.mxu0 0.0
        %747 = vmatmul.mubr.f32.gmra.mrb[0].mxu0 %v481
        %v748 = vpop.f32.mrb[0].mxu0
        %v749 = vadd.f32 0.0, %v748
        %v750 = vpop.f32.mrb[0].mxu0
        %751 = vmatprep.mubr.f32.mxu0 0.0
        %752 = vmatmul.mubr.f32.gmra.mrb[0].mxu0 %v484
        %v753 = vpop.f32.mrb[0].mxu0
        %v754 = vadd.f32 0.0, %v753
        %v755 = vpop.f32.mrb[0].mxu0
        %756 = vmatprep.mubr.f32.mxu0 0.0
        %757 = vmatmul.mubr.f32.gmra.mrb[0].mxu0 %v487
        %v758 = vpop.f32.mrb[0].mxu0
        %v759 = vadd.f32 0.0, %v758
        %v760 = vpop.f32.mrb[0].mxu0
        %761 = vmatprep.mubr.f32.mxu0 0.0
        %762 = vmatmul.mubr.f32.gmra.mrb[0].mxu0 %v490
        %v763 = vpop.f32.mrb[0].mxu0
        %v764 = vadd.f32 0.0, %v763
        %v765 = vpop.f32.mrb[0].mxu0
        %766 = vmatprep.mubr.f32.mxu0 0.0
        %767 = vmatmul.mubr.f32.gmra.mrb[0].mxu0 %v493
        %v768 = vpop.f32.mrb[0].mxu0
        %v769 = vadd.f32 0.0, %v768
        %v770 = vpop.f32.mrb[0].mxu0
        %771 = vmatprep.mubr.f32.mxu0 0.0
        %772 = vmatmul.mubr.f32.gmra.mrb[0].mxu0 %v496
        %v773 = vpop.f32.mrb[0].mxu0
        %v774 = vadd.f32 0.0, %v773
        %v775 = vpop.f32.mrb[0].mxu0
        %776 = vmatprep.mubr.f32.mxu0 0.0
        %777 = vmatmul.mubr.f32.gmra.mrb[0].mxu0 %v499
        %v778 = vpop.f32.mrb[0].mxu0
        %v779 = vadd.f32 0.0, %v778
        %v780 = vpop.f32.mrb[0].mxu0
        %781 = vmatprep.mubr.f32.mxu0 0.0
        %782 = vmatmul.mubr.f32.gmra.mrb[0].mxu0 %v502
        %v783 = vpop.f32.mrb[0].mxu0
        %v784 = vadd.f32 0.0, %v783
        %v785 = vpop.f32.mrb[0].mxu0
        %786 = vmatprep.mubr.f32.mxu0 0.0
        %787 = vmatmul.mubr.f32.gmra.mrb[0].mxu0 %v505
        %v788 = vpop.f32.mrb[0].mxu0
        %v789 = vadd.f32 0.0, %v788
        %v790 = vpop.f32.mrb[0].mxu0
        %791 = vmatprep.mubr.f32.mxu0 0.0
        %792 = vmatmul.mubr.f32.gmra.mrb[0].mxu0 %v508
        %v793 = vpop.f32.mrb[0].mxu0
        %v794 = vadd.f32 0.0, %v793
        %v795 = vpop.f32.mrb[0].mxu0
        %796 = vmatprep.mubr.f32.mxu0 0.0
        %797 = vmatmul.mubr.f32.gmra.mrb[0].mxu0 %v511
        %v798 = vpop.f32.mrb[0].mxu0
        %v799 = vadd.f32 0.0, %v798
        %v800 = vpop.f32.mrb[0].mxu0
        %801 = vmatprep.mubr.f32.mxu0 0.0
        %802 = vmatmul.mubr.f32.gmra.mrb[0].mxu0 %v514
        %v803 = vpop.f32.mrb[0].mxu0
        %v804 = vadd.f32 0.0, %v803
        %v805 = vpop.f32.mrb[0].mxu0
        %806 = vmatprep.mubr.f32.mxu0 0.0
        %807 = vmatmul.mubr.f32.gmra.mrb[0].mxu0 %v517
        %v808 = vpop.f32.mrb[0].mxu0
        %v809 = vadd.f32 0.0, %v808
        %v810 = vpop.f32.mrb[0].mxu0
        %811 = vmatprep.mubr.f32.mxu0 0.0
        %812 = vmatmul.mubr.f32.gmra.mrb[0].mxu0 %v520
        %v813 = vpop.f32.mrb[0].mxu0
        %v814 = vadd.f32 0.0, %v813
        %v815 = vpop.f32.mrb[0].mxu0
        %816 = vmatprep.mubr.f32.mxu0 0.0
        %817 = vmatmul.mubr.f32.gmra.mrb[0].mxu0 %v523
        %v818 = vpop.f32.mrb[0].mxu0
        %v819 = vadd.f32 0.0, %v818
        %v820 = vpop.f32.mrb[0].mxu0
        %821 = vmatprep.mubr.f32.mxu0 0.0
        %822 = vmatmul.mubr.f32.gmra.mrb[0].mxu0 %v526
        %v823 = vpop.f32.mrb[0].mxu0
        %v824 = vadd.f32 0.0, %v823
        %v825 = vpop.f32.mrb[0].mxu0
        %826 = vmatprep.mubr.f32.mxu0 0.0
        %827 = vmatmul.mubr.f32.gmra.mrb[0].mxu0 %v529
        %v828 = vpop.f32.mrb[0].mxu0
        %v829 = vadd.f32 0.0, %v828
        %v830 = vpop.f32.mrb[0].mxu0
        %831 = vmatprep.mubr.f32.mxu0 0.0
        %832 = vmatmul.mubr.f32.gmra.mrb[0].mxu0 %v532
        %v833 = vpop.f32.mrb[0].mxu0
        %v834 = vadd.f32 0.0, %v833
        %v835 = vpop.f32.mrb[0].mxu0
        %836 = vmatprep.mubr.f32.mxu0 0.0
        %837 = vmatmul.mubr.f32.gmra.mrb[0].mxu0 %v535
        %v838 = vpop.f32.mrb[0].mxu0
        %v839 = vadd.f32 0.0, %v838
        %v840 = vpop.f32.mrb[0].mxu0
        %841 = vmatprep.mubr.f32.mxu0 0.0
        %842 = vmatmul.mubr.f32.gmra.mrb[0].mxu0 %v538
        %v843 = vpop.f32.mrb[0].mxu0
        %v844 = vadd.f32 0.0, %v843
        %v845 = vpop.f32.mrb[0].mxu0
        %846 = vmatprep.mubr.f32.mxu0 0.0
        %847 = vmatmul.mubr.f32.gmra.mrb[0].mxu0 %v541
        %v848 = vpop.f32.mrb[0].mxu0
        %v849 = vadd.f32 0.0, %v848
        %v850 = vpop.f32.mrb[0].mxu0
        %851 = vmatprep.mubr.f32.mxu0 0.0
        %852 = vmatmul.mubr.f32.gmra.mrb[0].mxu0 %v544
        %v853 = vpop.f32.mrb[0].mxu0
        %v854 = vadd.f32 0.0, %v853
        %v855 = vpop.f32.mrb[0].mxu0
        %856 = vmatprep.mubr.f32.mxu0 0.0
        %857 = vmatmul.mubr.f32.gmra.mrb[0].mxu0 %v547
        %v858 = vpop.f32.mrb[0].mxu0
        %v859 = vadd.f32 0.0, %v858
        %v860 = vpop.f32.mrb[0].mxu0
        %861 = vmatprep.mubr.f32.mxu0 0.0
        %862 = vmatmul.mubr.f32.gmra.mrb[0].mxu0 %v550
        %v863 = vpop.f32.mrb[0].mxu0
        %v864 = vadd.f32 0.0, %v863
        %v865 = vpop.f32.mrb[0].mxu0
        %866 = vmatprep.mubr.f32.mxu0 0.0
        %867 = vmatmul.mubr.f32.gmra.mrb[0].mxu0 %v553
        %v868 = vpop.f32.mrb[0].mxu0
        %v869 = vadd.f32 0.0, %v868
        %v870 = vpop.f32.mrb[0].mxu0
        %871 = vmatprep.mubr.f32.mxu0 0.0
        %872 = vmatmul.mubr.f32.gmra.mrb[0].mxu0 %v556
        %v873 = vpop.f32.mrb[0].mxu0
        %v874 = vadd.f32 0.0, %v873
        %v875 = vpop.f32.mrb[0].mxu0
        %876 = vmatprep.mubr.f32.mxu0 0.0
        %877 = vmatmul.mubr.f32.gmra.mrb[0].mxu0 %v559
        %v878 = vpop.f32.mrb[0].mxu0
        %v879 = vadd.f32 0.0, %v878
        %v880 = vpop.f32.mrb[0].mxu0
        %881 = vmatprep.mubr.f32.mxu0 0.0
        %882 = vmatmul.mubr.f32.gmra.mrb[0].mxu0 %v562
        %v883 = vpop.f32.mrb[0].mxu0
        %v884 = vadd.f32 0.0, %v883
        %v885 = vpop.f32.mrb[0].mxu0
        %886 = vmatprep.mubr.f32.mxu0 0.0
        %887 = vmatmul.mubr.f32.gmra.mrb[0].mxu0 %v565
        %v888 = vpop.f32.mrb[0].mxu0
        %v889 = vadd.f32 0.0, %v888
        %v890 = vpop.f32.mrb[0].mxu0
        %891 = vmatprep.mubr.f32.mxu0 0.0
        %892 = vmatmul.mubr.f32.gmra.mrb[0].mxu0 %v568
        %v893 = vpop.f32.mrb[0].mxu0
        %v894 = vadd.f32 0.0, %v893
        %v895 = vpop.f32.mrb[0].mxu0
        %896 = vmatprep.mubr.f32.mxu0 0.0
        %897 = vmatmul.mubr.f32.gmra.mrb[0].mxu0 %v571
        %v898 = vpop.f32.mrb[0].mxu0
        %v899 = vadd.f32 0.0, %v898
        %v900 = vpop.f32.mrb[0].mxu0
        %901 = vmatprep.mubr.f32.mxu0 0.0
        %902 = vmatmul.mubr.f32.gmra.mrb[0].mxu0 %v574
        %v903 = vpop.f32.mrb[0].mxu0
        %v904 = vadd.f32 0.0, %v903
        %v905 = vpop.f32.mrb[0].mxu0
        %906 = vmatprep.mubr.f32.mxu0 0.0
        %907 = vmatmul.mubr.f32.gmra.mrb[0].mxu0 %v577
        %v908 = vpop.f32.mrb[0].mxu0
        %v909 = vadd.f32 0.0, %v908
        %v910 = vpop.f32.mrb[0].mxu0
        %911 = vmatprep.mubr.f32.mxu0 0.0
        %912 = vmatmul.mubr.f32.gmra.mrb[0].mxu0 %v580
        %v913 = vpop.f32.mrb[0].mxu0
        %v914 = vadd.f32 0.0, %v913
        %v915 = vpop.f32.mrb[0].mxu0
        %916 = vmatprep.mubr.f32.mxu0 0.0
        %917 = vmatmul.mubr.f32.gmra.mrb[0].mxu0 %v583
        %v918 = vpop.f32.mrb[0].mxu0
        %v919 = vadd.f32 0.0, %v918
        %v920 = vpop.f32.mrb[0].mxu0
        %921 = vmatprep.mubr.f32.mxu0 0.0
        %922 = vmatmul.mubr.f32.gmra.mrb[0].mxu0 %v586
        %v923 = vpop.f32.mrb[0].mxu0
        %v924 = vadd.f32 0.0, %v923
        %v925 = vpop.f32.mrb[0].mxu0
        %926 = vmatprep.mubr.f32.mxu0 0.0
        %927 = vmatmul.mubr.f32.gmra.mrb[0].mxu0 %v589
        %v928 = vpop.f32.mrb[0].mxu0
        %v929 = vadd.f32 0.0, %v928
        %v930 = vpop.f32.mrb[0].mxu0
        %931 = vmatprep.mubr.f32.mxu0 0.0
        %932 = vmatmul.mubr.f32.gmra.mrb[0].mxu0 %v592
        %v933 = vpop.f32.mrb[0].mxu0
        %v934 = vadd.f32 0.0, %v933
        %v935 = vpop.f32.mrb[0].mxu0
        %936 = vmatprep.mubr.f32.mxu0 0.0
        %937 = vmatmul.mubr.f32.gmra.mrb[0].mxu0 %v595
        %v938 = vpop.f32.mrb[0].mxu0
        %v939 = vadd.f32 0.0, %v938
        %v940 = vpop.f32.mrb[0].mxu0
        %941 = vmatprep.mubr.f32.mxu0 0.0
        %942 = vmatmul.mubr.f32.gmra.mrb[0].mxu0 %v598
        %v943 = vpop.f32.mrb[0].mxu0
        %v944 = vadd.f32 0.0, %v943
        %v945 = vpop.f32.mrb[0].mxu0
        %946 = vmatprep.mubr.f32.mxu0 0.0
        %947 = vmatmul.mubr.f32.gmra.mrb[0].mxu0 %v601
        %v948 = vpop.f32.mrb[0].mxu0
        %v949 = vadd.f32 0.0, %v948
        %v950 = vpop.f32.mrb[0].mxu0
        %951 = vmatprep.mubr.f32.mxu0 0.0
        %952 = vmatmul.mubr.f32.gmra.mrb[0].mxu0 %v604
        %v953 = vpop.f32.mrb[0].mxu0
        %v954 = vadd.f32 0.0, %v953
        %v955 = vpop.f32.mrb[0].mxu0
        %956 = vmatprep.mubr.f32.mxu0 0.0
        %957 = vmatmul.mubr.f32.gmra.mrb[0].mxu0 %v607
        %v958 = vpop.f32.mrb[0].mxu0
        %v959 = vadd.f32 0.0, %v958
        %v960 = vpop.f32.mrb[0].mxu0
        %961 = vmatprep.mubr.f32.mxu0 0.0
        %962 = vmatmul.mubr.f32.gmra.mrb[0].mxu0 %v610
        %v963 = vpop.f32.mrb[0].mxu0
        %v964 = vadd.f32 0.0, %v963
        %v965 = vpop.f32.mrb[0].mxu0
        %966 = vmatprep.mubr.f32.mxu0 0.0
        %967 = vmatmul.mubr.f32.gmra.mrb[0].mxu0 %v613
        %v968 = vpop.f32.mrb[0].mxu0
        %v969 = vadd.f32 0.0, %v968
        %v970 = vpop.f32.mrb[0].mxu0
        %971 = vmatprep.mubr.f32.mxu0 0.0
        %972 = vmatmul.mubr.f32.gmra.mrb[0].mxu0 %v616
        %v973 = vpop.f32.mrb[0].mxu0
        %v974 = vadd.f32 0.0, %v973
        %v975 = vpop.f32.mrb[0].mxu0
        %976 = vmatprep.mubr.f32.mxu0 0.0
        %977 = vmatmul.mubr.f32.gmra.mrb[0].mxu0 %v619
        %v978 = vpop.f32.mrb[0].mxu0
        %v979 = vadd.f32 0.0, %v978
        %v980 = vpop.f32.mrb[0].mxu0
        %981 = vmatprep.mubr.f32.mxu0 0.0
        %982 = vmatmul.mubr.f32.gmra.mrb[0].mxu0 %v622
        %v983 = vpop.f32.mrb[0].mxu0
        %v984 = vadd.f32 0.0, %v983
        %v985 = vpop.f32.mrb[0].mxu0
        %986 = vmatprep.mubr.f32.mxu0 0.0
        %987 = vmatmul.mubr.f32.gmra.mrb[0].mxu0 %v625
        %v988 = vpop.f32.mrb[0].mxu0
        %v989 = vadd.f32 0.0, %v988
        %v990 = vpop.f32.mrb[0].mxu0
        %991 = vmatprep.mubr.f32.mxu0 0.0
        %992 = vmatmul.mubr.f32.gmra.mrb[0].mxu0 %v628
        %v993 = vpop.f32.mrb[0].mxu0
        %v994 = vadd.f32 0.0, %v993
        %v995 = vpop.f32.mrb[0].mxu0
        %996 = vmatprep.mubr.f32.mxu0 0.0
        %997 = vmatmul.mubr.f32.gmra.mrb[0].mxu0 %v631
        %v998 = vpop.f32.mrb[0].mxu0
        %v999 = vadd.f32 0.0, %v998
        %v1000 = vpop.f32.mrb[0].mxu0
        %1001 = vmatprep.mubr.f32.mxu0 0.0
        %1002 = vmatmul.mubr.f32.gmra.mrb[0].mxu0 %v634
        %v1003 = vpop.f32.mrb[0].mxu0
        %v1004 = vadd.f32 0.0, %v1003
        %v1005 = vpop.f32.mrb[0].mxu0
        %1006 = vmatprep.mubr.f32.mxu0 0.0
        %1007 = vmatmul.mubr.f32.gmra.mrb[0].mxu0 %v637
        %v1008 = vpop.f32.mrb[0].mxu0
        %v1009 = vadd.f32 0.0, %v1008
        %v1010 = vpop.f32.mrb[0].mxu0
        %1011 = vmatprep.mubr.f32.mxu0 0.0
        %1012 = vmatmul.mubr.f32.gmra.mrb[0].mxu0 %v640
        %v1013 = vpop.f32.mrb[0].mxu0
        %v1014 = vadd.f32 0.0, %v1013
        %v1015 = vpop.f32.mrb[0].mxu0
        %1016 = vmatprep.mubr.f32.mxu0 0.0
        %1017 = vmatmul.mubr.f32.gmra.mrb[0].mxu0 %v643
        %v1018 = vpop.f32.mrb[0].mxu0
        %v1019 = vadd.f32 0.0, %v1018
        %v1020 = vpop.f32.mrb[0].mxu0
        %1021 = vmatprep.mubr.f32.mxu0 0.0
        %1022 = vmatmul.mubr.f32.gmra.mrb[0].mxu0 %v646
        %v1023 = vpop.f32.mrb[0].mxu0
        %v1024 = vadd.f32 0.0, %v1023
        %v1025 = vpop.f32.mrb[0].mxu0
        %1026 = vmatprep.mubr.f32.mxu0 0.0
        %1027 = vmatmul.mubr.f32.gmra.mrb[0].mxu0 %v649
        %v1028 = vpop.f32.mrb[0].mxu0
        %v1029 = vadd.f32 0.0, %v1028
        %v1030 = vpop.f32.mrb[0].mxu0
        %1031 = vmatprep.mubr.f32.mxu0 0.0
        %1032 = vmatmul.mubr.f32.gmra.mrb[0].mxu0 %v652
        %v1033 = vpop.f32.mrb[0].mxu0
        %v1034 = vadd.f32 0.0, %v1033
        %v1035 = vpop.f32.mrb[0].mxu0
        %1036 = vmatprep.mubr.f32.mxu0 0.0
        %1037 = vmatmul.mubr.f32.gmra.mrb[0].mxu0 %v655
        %v1038 = vpop.f32.mrb[0].mxu0
        %v1039 = vadd.f32 0.0, %v1038
        %v1040 = vpop.f32.mrb[0].mxu0
        %1041 = vdwg.mxu0
        %v1042 = vcvt.f32.s32.to.zero.pseudo %v724
        %v1043 = vcvt.f32.s32.to.zero.pseudo %v729
        %v1044 = vcvt.f32.s32.to.zero.pseudo %v734
        %v1045 = vcvt.f32.s32.to.zero.pseudo %v739
        %v1046 = vcvt.f32.s32.to.zero.pseudo %v744
        %v1047 = vcvt.f32.s32.to.zero.pseudo %v749
        %v1048 = vcvt.f32.s32.to.zero.pseudo %v754
        %v1049 = vcvt.f32.s32.to.zero.pseudo %v759
        %v1050 = vcvt.f32.s32.to.zero.pseudo %v764
        %v1051 = vcvt.f32.s32.to.zero.pseudo %v769
        %v1052 = vcvt.f32.s32.to.zero.pseudo %v774
        %v1053 = vcvt.f32.s32.to.zero.pseudo %v779
        %v1054 = vcvt.f32.s32.to.zero.pseudo %v784
        %v1055 = vcvt.f32.s32.to.zero.pseudo %v789
        %v1056 = vcvt.f32.s32.to.zero.pseudo %v794
        %v1057 = vcvt.f32.s32.to.zero.pseudo %v799
        %v1058 = vcvt.f32.s32.to.zero.pseudo %v804
        %v1059 = vcvt.f32.s32.to.zero.pseudo %v809
        %v1060 = vcvt.f32.s32.to.zero.pseudo %v814
        %v1061 = vcvt.f32.s32.to.zero.pseudo %v819
        %v1062 = vcvt.f32.s32.to.zero.pseudo %v824
        %v1063 = vcvt.f32.s32.to.zero.pseudo %v829
        %v1064 = vcvt.f32.s32.to.zero.pseudo %v834
        %v1065 = vcvt.f32.s32.to.zero.pseudo %v839
        %v1066 = vcvt.f32.s32.to.zero.pseudo %v844
        %v1067 = vcvt.f32.s32.to.zero.pseudo %v849
        %v1068 = vcvt.f32.s32.to.zero.pseudo %v854
        %v1069 = vcvt.f32.s32.to.zero.pseudo %v859
        %v1070 = vcvt.f32.s32.to.zero.pseudo %v864
        %v1071 = vcvt.f32.s32.to.zero.pseudo %v869
        %v1072 = vcvt.f32.s32.to.zero.pseudo %v874
        %v1073 = vcvt.f32.s32.to.zero.pseudo %v879
        %v1074 = vcvt.f32.s32.to.zero.pseudo %v884
        %v1075 = vcvt.f32.s32.to.zero.pseudo %v889
        %v1076 = vcvt.f32.s32.to.zero.pseudo %v894
        %v1077 = vcvt.f32.s32.to.zero.pseudo %v899
        %v1078 = vcvt.f32.s32.to.zero.pseudo %v904
        %v1079 = vcvt.f32.s32.to.zero.pseudo %v909
        %v1080 = vcvt.f32.s32.to.zero.pseudo %v914
        %v1081 = vcvt.f32.s32.to.zero.pseudo %v919
        %v1082 = vcvt.f32.s32.to.zero.pseudo %v924
        %v1083 = vcvt.f32.s32.to.zero.pseudo %v929
        %v1084 = vcvt.f32.s32.to.zero.pseudo %v934
        %v1085 = vcvt.f32.s32.to.zero.pseudo %v939
        %v1086 = vcvt.f32.s32.to.zero.pseudo %v944
        %v1087 = vcvt.f32.s32.to.zero.pseudo %v949
        %v1088 = vcvt.f32.s32.to.zero.pseudo %v954
        %v1089 = vcvt.f32.s32.to.zero.pseudo %v959
        %v1090 = vcvt.f32.s32.to.zero.pseudo %v964
        %v1091 = vcvt.f32.s32.to.zero.pseudo %v969
        %v1092 = vcvt.f32.s32.to.zero.pseudo %v974
        %v1093 = vcvt.f32.s32.to.zero.pseudo %v979
        %v1094 = vcvt.f32.s32.to.zero.pseudo %v984
        %v1095 = vcvt.f32.s32.to.zero.pseudo %v989
        %v1096 = vcvt.f32.s32.to.zero.pseudo %v994
        %v1097 = vcvt.f32.s32.to.zero.pseudo %v999
        %v1098 = vcvt.f32.s32.to.zero.pseudo %v1004
        %v1099 = vcvt.f32.s32.to.zero.pseudo %v1009
        %v1100 = vcvt.f32.s32.to.zero.pseudo %v1014
        %v1101 = vcvt.f32.s32.to.zero.pseudo %v1019
        %v1102 = vcvt.f32.s32.to.zero.pseudo %v1024
        %v1103 = vcvt.f32.s32.to.zero.pseudo %v1029
        %v1104 = vcvt.f32.s32.to.zero.pseudo %v1034
        %v1105 = vcvt.f32.s32.to.zero.pseudo %v1039
        %v1106 = vld [vmem:[%s2] sm:$0x1]
        %v1107 = vlaneseq
        %v1108 = vshrl.u32 %v1107, 7
        %v1109 = vsub.s32 0, %v1108
        %v1110 = vrot.slane %v1106, %v1109
        %v1111 = vand.u32 %v1042, %v1110
        %v1112 = vand.u32 %v1043, %v1110
        %v1113 = vand.u32 %v1044, %v1110
        %v1114 = vand.u32 %v1045, %v1110
        %v1115 = vand.u32 %v1046, %v1110
        %v1116 = vand.u32 %v1047, %v1110
        %v1117 = vand.u32 %v1048, %v1110
        %v1118 = vand.u32 %v1049, %v1110
        %v1119 = vand.u32 %v1050, %v1110
        %v1120 = vand.u32 %v1051, %v1110
        %v1121 = vand.u32 %v1052, %v1110
        %v1122 = vand.u32 %v1053, %v1110
        %v1123 = vand.u32 %v1054, %v1110
        %v1124 = vand.u32 %v1055, %v1110
        %v1125 = vand.u32 %v1056, %v1110
        %v1126 = vand.u32 %v1057, %v1110
        %v1127 = vand.u32 %v1058, %v1110
        %v1128 = vand.u32 %v1059, %v1110
        %v1129 = vand.u32 %v1060, %v1110
        %v1130 = vand.u32 %v1061, %v1110
        %v1131 = vand.u32 %v1062, %v1110
        %v1132 = vand.u32 %v1063, %v1110
        %v1133 = vand.u32 %v1064, %v1110
        %v1134 = vand.u32 %v1065, %v1110
        %v1135 = vand.u32 %v1066, %v1110
        %v1136 = vand.u32 %v1067, %v1110
        %v1137 = vand.u32 %v1068, %v1110
        %v1138 = vand.u32 %v1069, %v1110
        %v1139 = vand.u32 %v1070, %v1110
        %v1140 = vand.u32 %v1071, %v1110
        %v1141 = vand.u32 %v1072, %v1110
        %v1142 = vand.u32 %v1073, %v1110
        %v1143 = vand.u32 %v1074, %v1110
        %v1144 = vand.u32 %v1075, %v1110
        %v1145 = vand.u32 %v1076, %v1110
        %v1146 = vand.u32 %v1077, %v1110
        %v1147 = vand.u32 %v1078, %v1110
        %v1148 = vand.u32 %v1079, %v1110
        %v1149 = vand.u32 %v1080, %v1110
        %v1150 = vand.u32 %v1081, %v1110
        %v1151 = vand.u32 %v1082, %v1110
        %v1152 = vand.u32 %v1083, %v1110
        %v1153 = vand.u32 %v1084, %v1110
        %v1154 = vand.u32 %v1085, %v1110
        %v1155 = vand.u32 %v1086, %v1110
        %v1156 = vand.u32 %v1087, %v1110
        %v1157 = vand.u32 %v1088, %v1110
        %v1158 = vand.u32 %v1089, %v1110
        %v1159 = vand.u32 %v1090, %v1110
        %v1160 = vand.u32 %v1091, %v1110
        %v1161 = vand.u32 %v1092, %v1110
        %v1162 = vand.u32 %v1093, %v1110
        %v1163 = vand.u32 %v1094, %v1110
        %v1164 = vand.u32 %v1095, %v1110
        %v1165 = vand.u32 %v1096, %v1110
        %v1166 = vand.u32 %v1097, %v1110
        %v1167 = vand.u32 %v1098, %v1110
        %v1168 = vand.u32 %v1099, %v1110
        %v1169 = vand.u32 %v1100, %v1110
        %v1170 = vand.u32 %v1101, %v1110
        %v1171 = vand.u32 %v1102, %v1110
        %v1172 = vand.u32 %v1103, %v1110
        %v1173 = vand.u32 %v1104, %v1110
        %v1174 = vand.u32 %v1105, %v1110
        %vm1175 = vcmp.gt.s32.totalorder %v1111, 0
        %vm1176 = vcmp.gt.s32.totalorder %v1112, 0
        %vm1177 = vcmp.gt.s32.totalorder %v1113, 0
        %vm1178 = vcmp.gt.s32.totalorder %v1114, 0
        %vm1179 = vcmp.gt.s32.totalorder %v1115, 0
        %vm1180 = vcmp.gt.s32.totalorder %v1116, 0
        %vm1181 = vcmp.gt.s32.totalorder %v1117, 0
        %vm1182 = vcmp.gt.s32.totalorder %v1118, 0
        %vm1183 = vcmp.gt.s32.totalorder %v1119, 0
        %vm1184 = vcmp.gt.s32.totalorder %v1120, 0
        %vm1185 = vcmp.gt.s32.totalorder %v1121, 0
        %vm1186 = vcmp.gt.s32.totalorder %v1122, 0
        %vm1187 = vcmp.gt.s32.totalorder %v1123, 0
        %vm1188 = vcmp.gt.s32.totalorder %v1124, 0
        %vm1189 = vcmp.gt.s32.totalorder %v1125, 0
        %vm1190 = vcmp.gt.s32.totalorder %v1126, 0
        %vm1191 = vcmp.gt.s32.totalorder %v1127, 0
        %vm1192 = vcmp.gt.s32.totalorder %v1128, 0
        %vm1193 = vcmp.gt.s32.totalorder %v1129, 0
        %vm1194 = vcmp.gt.s32.totalorder %v1130, 0
        %vm1195 = vcmp.gt.s32.totalorder %v1131, 0
        %vm1196 = vcmp.gt.s32.totalorder %v1132, 0
        %vm1197 = vcmp.gt.s32.totalorder %v1133, 0
        %vm1198 = vcmp.gt.s32.totalorder %v1134, 0
        %vm1199 = vcmp.gt.s32.totalorder %v1135, 0
        %vm1200 = vcmp.gt.s32.totalorder %v1136, 0
        %vm1201 = vcmp.gt.s32.totalorder %v1137, 0
        %vm1202 = vcmp.gt.s32.totalorder %v1138, 0
        %vm1203 = vcmp.gt.s32.totalorder %v1139, 0
        %vm1204 = vcmp.gt.s32.totalorder %v1140, 0
        %vm1205 = vcmp.gt.s32.totalorder %v1141, 0
        %vm1206 = vcmp.gt.s32.totalorder %v1142, 0
        %vm1207 = vcmp.gt.s32.totalorder %v1143, 0
        %vm1208 = vcmp.gt.s32.totalorder %v1144, 0
        %vm1209 = vcmp.gt.s32.totalorder %v1145, 0
        %vm1210 = vcmp.gt.s32.totalorder %v1146, 0
        %vm1211 = vcmp.gt.s32.totalorder %v1147, 0
        %vm1212 = vcmp.gt.s32.totalorder %v1148, 0
        %vm1213 = vcmp.gt.s32.totalorder %v1149, 0
        %vm1214 = vcmp.gt.s32.totalorder %v1150, 0
        %vm1215 = vcmp.gt.s32.totalorder %v1151, 0
        %vm1216 = vcmp.gt.s32.totalorder %v1152, 0
        %vm1217 = vcmp.gt.s32.totalorder %v1153, 0
        %vm1218 = vcmp.gt.s32.totalorder %v1154, 0
        %vm1219 = vcmp.gt.s32.totalorder %v1155, 0
        %vm1220 = vcmp.gt.s32.totalorder %v1156, 0
        %vm1221 = vcmp.gt.s32.totalorder %v1157, 0
        %vm1222 = vcmp.gt.s32.totalorder %v1158, 0
        %vm1223 = vcmp.gt.s32.totalorder %v1159, 0
        %vm1224 = vcmp.gt.s32.totalorder %v1160, 0
        %vm1225 = vcmp.gt.s32.totalorder %v1161, 0
        %vm1226 = vcmp.gt.s32.totalorder %v1162, 0
        %vm1227 = vcmp.gt.s32.totalorder %v1163, 0
        %vm1228 = vcmp.gt.s32.totalorder %v1164, 0
        %vm1229 = vcmp.gt.s32.totalorder %v1165, 0
        %vm1230 = vcmp.gt.s32.totalorder %v1166, 0
        %vm1231 = vcmp.gt.s32.totalorder %v1167, 0
        %vm1232 = vcmp.gt.s32.totalorder %v1168, 0
        %vm1233 = vcmp.gt.s32.totalorder %v1169, 0
        %vm1234 = vcmp.gt.s32.totalorder %v1170, 0
        %vm1235 = vcmp.gt.s32.totalorder %v1171, 0
        %vm1236 = vcmp.gt.s32.totalorder %v1172, 0
        %vm1237 = vcmp.gt.s32.totalorder %v1173, 0
        %vm1238 = vcmp.gt.s32.totalorder %v1174, 0
        %v1239 = vsel %vm1175, 1, 0
        %v1240 = vsel %vm1176, 1, 0
        %v1241 = vsel %vm1177, 1, 0
        %v1242 = vsel %vm1178, 1, 0
        %v1243 = vsel %vm1179, 1, 0
        %v1244 = vsel %vm1180, 1, 0
        %v1245 = vsel %vm1181, 1, 0
        %v1246 = vsel %vm1182, 1, 0
        %v1247 = vsel %vm1183, 1, 0
        %v1248 = vsel %vm1184, 1, 0
        %v1249 = vsel %vm1185, 1, 0
        %v1250 = vsel %vm1186, 1, 0
        %v1251 = vsel %vm1187, 1, 0
        %v1252 = vsel %vm1188, 1, 0
        %v1253 = vsel %vm1189, 1, 0
        %v1254 = vsel %vm1190, 1, 0
        %v1255 = vsel %vm1191, 1, 0
        %v1256 = vsel %vm1192, 1, 0
        %v1257 = vsel %vm1193, 1, 0
        %v1258 = vsel %vm1194, 1, 0
        %v1259 = vsel %vm1195, 1, 0
        %v1260 = vsel %vm1196, 1, 0
        %v1261 = vsel %vm1197, 1, 0
        %v1262 = vsel %vm1198, 1, 0
        %v1263 = vsel %vm1199, 1, 0
        %v1264 = vsel %vm1200, 1, 0
        %v1265 = vsel %vm1201, 1, 0
        %v1266 = vsel %vm1202, 1, 0
        %v1267 = vsel %vm1203, 1, 0
        %v1268 = vsel %vm1204, 1, 0
        %v1269 = vsel %vm1205, 1, 0
        %v1270 = vsel %vm1206, 1, 0
        %v1271 = vsel %vm1207, 1, 0
        %v1272 = vsel %vm1208, 1, 0
        %v1273 = vsel %vm1209, 1, 0
        %v1274 = vsel %vm1210, 1, 0
        %v1275 = vsel %vm1211, 1, 0
        %v1276 = vsel %vm1212, 1, 0
        %v1277 = vsel %vm1213, 1, 0
        %v1278 = vsel %vm1214, 1, 0
        %v1279 = vsel %vm1215, 1, 0
        %v1280 = vsel %vm1216, 1, 0
        %v1281 = vsel %vm1217, 1, 0
        %v1282 = vsel %vm1218, 1, 0
        %v1283 = vsel %vm1219, 1, 0
        %v1284 = vsel %vm1220, 1, 0
        %v1285 = vsel %vm1221, 1, 0
        %v1286 = vsel %vm1222, 1, 0
        %v1287 = vsel %vm1223, 1, 0
        %v1288 = vsel %vm1224, 1, 0
        %v1289 = vsel %vm1225, 1, 0
        %v1290 = vsel %vm1226, 1, 0
        %v1291 = vsel %vm1227, 1, 0
        %v1292 = vsel %vm1228, 1, 0
        %v1293 = vsel %vm1229, 1, 0
        %v1294 = vsel %vm1230, 1, 0
        %v1295 = vsel %vm1231, 1, 0
        %v1296 = vsel %vm1232, 1, 0
        %v1297 = vsel %vm1233, 1, 0
        %v1298 = vsel %vm1234, 1, 0
        %v1299 = vsel %vm1235, 1, 0
        %v1300 = vsel %vm1236, 1, 0
        %v1301 = vsel %vm1237, 1, 0
        %v1302 = vsel %vm1238, 1, 0
        %v1303 = vcvt.s32.f32 %v1239
        %v1304 = vcvt.s32.f32 %v1240
        %v1305 = vcvt.s32.f32 %v1241
        %v1306 = vcvt.s32.f32 %v1242
        %v1307 = vcvt.s32.f32 %v1243
        %v1308 = vcvt.s32.f32 %v1244
        %v1309 = vcvt.s32.f32 %v1245
        %v1310 = vcvt.s32.f32 %v1246
        %v1311 = vcvt.s32.f32 %v1247
        %v1312 = vcvt.s32.f32 %v1248
        %v1313 = vcvt.s32.f32 %v1249
        %v1314 = vcvt.s32.f32 %v1250
        %v1315 = vcvt.s32.f32 %v1251
        %v1316 = vcvt.s32.f32 %v1252
        %v1317 = vcvt.s32.f32 %v1253
        %v1318 = vcvt.s32.f32 %v1254
        %v1319 = vcvt.s32.f32 %v1255
        %v1320 = vcvt.s32.f32 %v1256
        %v1321 = vcvt.s32.f32 %v1257
        %v1322 = vcvt.s32.f32 %v1258
        %v1323 = vcvt.s32.f32 %v1259
        %v1324 = vcvt.s32.f32 %v1260
        %v1325 = vcvt.s32.f32 %v1261
        %v1326 = vcvt.s32.f32 %v1262
        %v1327 = vcvt.s32.f32 %v1263
        %v1328 = vcvt.s32.f32 %v1264
        %v1329 = vcvt.s32.f32 %v1265
        %v1330 = vcvt.s32.f32 %v1266
        %v1331 = vcvt.s32.f32 %v1267
        %v1332 = vcvt.s32.f32 %v1268
        %v1333 = vcvt.s32.f32 %v1269
        %v1334 = vcvt.s32.f32 %v1270
        %v1335 = vcvt.s32.f32 %v1271
        %v1336 = vcvt.s32.f32 %v1272
        %v1337 = vcvt.s32.f32 %v1273
        %v1338 = vcvt.s32.f32 %v1274
        %v1339 = vcvt.s32.f32 %v1275
        %v1340 = vcvt.s32.f32 %v1276
        %v1341 = vcvt.s32.f32 %v1277
        %v1342 = vcvt.s32.f32 %v1278
        %v1343 = vcvt.s32.f32 %v1279
        %v1344 = vcvt.s32.f32 %v1280
        %v1345 = vcvt.s32.f32 %v1281
        %v1346 = vcvt.s32.f32 %v1282
        %v1347 = vcvt.s32.f32 %v1283
        %v1348 = vcvt.s32.f32 %v1284
        %v1349 = vcvt.s32.f32 %v1285
        %v1350 = vcvt.s32.f32 %v1286
        %v1351 = vcvt.s32.f32 %v1287
        %v1352 = vcvt.s32.f32 %v1288
        %v1353 = vcvt.s32.f32 %v1289
        %v1354 = vcvt.s32.f32 %v1290
        %v1355 = vcvt.s32.f32 %v1291
        %v1356 = vcvt.s32.f32 %v1292
        %v1357 = vcvt.s32.f32 %v1293
        %v1358 = vcvt.s32.f32 %v1294
        %v1359 = vcvt.s32.f32 %v1295
        %v1360 = vcvt.s32.f32 %v1296
        %v1361 = vcvt.s32.f32 %v1297
        %v1362 = vcvt.s32.f32 %v1298
        %v1363 = vcvt.s32.f32 %v1299
        %v1364 = vcvt.s32.f32 %v1300
        %v1365 = vcvt.s32.f32 %v1301
        %v1366 = vcvt.s32.f32 %v1302
        %v1367 = vpack.c.bf16 %v1304, %v1303
        %v1368 = vpack.c.bf16 %v1306, %v1305
        %v1369 = vpack.c.bf16 %v1308, %v1307
        %v1370 = vpack.c.bf16 %v1310, %v1309
        %v1371 = vpack.c.bf16 %v1312, %v1311
        %v1372 = vpack.c.bf16 %v1314, %v1313
        %v1373 = vpack.c.bf16 %v1316, %v1315
        %v1374 = vpack.c.bf16 %v1318, %v1317
        %v1375 = vpack.c.bf16 %v1320, %v1319
        %v1376 = vpack.c.bf16 %v1322, %v1321
        %v1377 = vpack.c.bf16 %v1324, %v1323
        %v1378 = vpack.c.bf16 %v1326, %v1325
        %v1379 = vpack.c.bf16 %v1328, %v1327
        %v1380 = vpack.c.bf16 %v1330, %v1329
        %v1381 = vpack.c.bf16 %v1332, %v1331
        %v1382 = vpack.c.bf16 %v1334, %v1333
        %v1383 = vpack.c.bf16 %v1336, %v1335
        %v1384 = vpack.c.bf16 %v1338, %v1337
        %v1385 = vpack.c.bf16 %v1340, %v1339
        %v1386 = vpack.c.bf16 %v1342, %v1341
        %v1387 = vpack.c.bf16 %v1344, %v1343
        %v1388 = vpack.c.bf16 %v1346, %v1345
        %v1389 = vpack.c.bf16 %v1348, %v1347
        %v1390 = vpack.c.bf16 %v1350, %v1349
        %v1391 = vpack.c.bf16 %v1352, %v1351
        %v1392 = vpack.c.bf16 %v1354, %v1353
        %v1393 = vpack.c.bf16 %v1356, %v1355
        %v1394 = vpack.c.bf16 %v1358, %v1357
        %v1395 = vpack.c.bf16 %v1360, %v1359
        %v1396 = vpack.c.bf16 %v1362, %v1361
        %v1397 = vpack.c.bf16 %v1364, %v1363
        %v1398 = vpack.c.bf16 %v1366, %v1365
        %v1399 = vld [vmem:[%s3] sm:$0xf]
        %v1400 = vld [vmem:[%s3 + $0x4] sm:$0xf]
        %v1401 = vld [vmem:[%s4] sm:$0x1]
        %v1403 = vlaneseq
        %v1404 = vshrl.u32 %v1403, 7
        %v1405 = vsub.s32 0, %v1404
        %v1406 = vrot.slane %v1401, %v1405
        %v1410 = vunpack.c.l.b16 %v1399
        %v1411 = vunpack.c.l.b16 %v1400
        %v1412 = vpack.c.b16 %v1411, %v1410
        %vm1414 = vcmask 130048
        %v1416 = vsel %vm1414, %v1367, 0
        %v1419 = vsel %vm1414, %v1368, 0
        %v1422 = vsel %vm1414, %v1369, 0
        %v1425 = vsel %vm1414, %v1370, 0
        %v1428 = vsel %vm1414, %v1371, 0
        %v1431 = vsel %vm1414, %v1372, 0
        %v1434 = vsel %vm1414, %v1373, 0
        %v1437 = vsel %vm1414, %v1374, 0
        %v1440 = vsel %vm1414, %v1375, 0
        %v1443 = vsel %vm1414, %v1376, 0
        %v1446 = vsel %vm1414, %v1377, 0
        %v1449 = vsel %vm1414, %v1378, 0
        %v1452 = vsel %vm1414, %v1379, 0
        %v1455 = vsel %vm1414, %v1380, 0
        %v1458 = vsel %vm1414, %v1381, 0
        %v1461 = vsel %vm1414, %v1382, 0
        %v1464 = vsel %vm1414, %v1383, 0
        %v1467 = vsel %vm1414, %v1384, 0
        %v1470 = vsel %vm1414, %v1385, 0
        %v1473 = vsel %vm1414, %v1386, 0
        %v1476 = vsel %vm1414, %v1387, 0
        %v1479 = vsel %vm1414, %v1388, 0
        %v1482 = vsel %vm1414, %v1389, 0
        %v1485 = vsel %vm1414, %v1390, 0
        %v1488 = vsel %vm1414, %v1391, 0
        %v1491 = vsel %vm1414, %v1392, 0
        %v1494 = vsel %vm1414, %v1393, 0
        %v1497 = vsel %vm1414, %v1394, 0
        %v1500 = vsel %vm1414, %v1395, 0
        %v1503 = vsel %vm1414, %v1396, 0
        %v1506 = vsel %vm1414, %v1397, 0
        %v1509 = vsel %vm1414, %v1398, 0
        %1511 = vmatprep.subr.bf16.mxu0 0
        %1512 = vmatpush1.bf16.msra.mxu0 %v1412
        %1513 = vmatprep.subr.bf16.mxu0 0
        %1514 = vmatpush1.bf16.msra.mxu0 0
        %1515 = vmatprep.subr.bf16.mxu0 0
        %1516 = vmatpush1.bf16.msra.mxu0 0
        %1517 = vmatprep.subr.bf16.mxu0 0
        %1518 = vmatpush1.bf16.msra.mxu0 0
        %1519 = vmatprep.subr.bf16.mxu0 0
        %1520 = vmatpush1.bf16.msra.mxu0 0
        %1521 = vmatprep.subr.bf16.mxu0 0
        %1522 = vmatpush1.bf16.msra.mxu0 0
        %1523 = vmatprep.subr.bf16.mxu0 0
        %1524 = vmatpush1.bf16.msra.mxu0 0
        %1525 = vmatprep.subr.bf16.mxu0 0
        %1526 = vmatpush1.bf16.msra.mxu0 0
        %1527 = vmatprep.subr.bf16.mxu0 0
        %1528 = vmatpush1.bf16.msra.mxu0 0
        %1529 = vmatprep.subr.bf16.mxu0 0
        %1530 = vmatpush1.bf16.msra.mxu0 0
        %1531 = vmatprep.subr.bf16.mxu0 0
        %1532 = vmatpush1.bf16.msra.mxu0 0
        %1533 = vmatprep.subr.bf16.mxu0 0
        %1534 = vmatpush1.bf16.msra.mxu0 0
        %1535 = vmatprep.subr.bf16.mxu0 0
        %1536 = vmatpush1.bf16.msra.mxu0 0
        %1537 = vmatprep.subr.bf16.mxu0 0
        %1538 = vmatpush1.bf16.msra.mxu0 0
        %1539 = vmatprep.subr.bf16.mxu0 0
        %1540 = vmatpush1.bf16.msra.mxu0 0
        %1541 = vmatprep.subr.bf16.mxu0 0
        %1542 = vmatpush1.bf16.msra.mxu0 0
        %1543 = vmatprep.mubr.bf16.mxu0 0
        %1544 = vmatmul.mubr.bf16.gmra.mrb[0].mxu0 %v1416
        %v1545 = vpop.f32.mrb[0].mxu0
        %v1546 = vadd.f32 %v1406, %v1545
        %v1547 = vpop.f32.mrb[0].mxu0
        %v1548 = vpop.f32.mrb[0].mxu0
        %v1549 = vadd.f32 %v1406, %v1548
        %v1550 = vpop.f32.mrb[0].mxu0
        %1551 = vmatprep.mubr.bf16.mxu0 0
        %1552 = vmatmul.mubr.bf16.gmra.mrb[0].mxu0 %v1419
        %v1553 = vpop.f32.mrb[0].mxu0
        %v1554 = vadd.f32 %v1406, %v1553
        %v1555 = vpop.f32.mrb[0].mxu0
        %v1556 = vpop.f32.mrb[0].mxu0
        %v1557 = vadd.f32 %v1406, %v1556
        %v1558 = vpop.f32.mrb[0].mxu0
        %1559 = vmatprep.mubr.bf16.mxu0 0
        %1560 = vmatmul.mubr.bf16.gmra.mrb[0].mxu0 %v1422
        %v1561 = vpop.f32.mrb[0].mxu0
        %v1562 = vadd.f32 %v1406, %v1561
        %v1563 = vpop.f32.mrb[0].mxu0
        %v1564 = vpop.f32.mrb[0].mxu0
        %v1565 = vadd.f32 %v1406, %v1564
        %v1566 = vpop.f32.mrb[0].mxu0
        %1567 = vmatprep.mubr.bf16.mxu0 0
        %1568 = vmatmul.mubr.bf16.gmra.mrb[0].mxu0 %v1425
        %v1569 = vpop.f32.mrb[0].mxu0
        %v1570 = vadd.f32 %v1406, %v1569
        %v1571 = vpop.f32.mrb[0].mxu0
        %v1572 = vpop.f32.mrb[0].mxu0
        %v1573 = vadd.f32 %v1406, %v1572
        %v1574 = vpop.f32.mrb[0].mxu0
        %1575 = vmatprep.mubr.bf16.mxu0 0
        %1576 = vmatmul.mubr.bf16.gmra.mrb[0].mxu0 %v1428
        %v1577 = vpop.f32.mrb[0].mxu0
        %v1578 = vadd.f32 %v1406, %v1577
        %v1579 = vpop.f32.mrb[0].mxu0
        %v1580 = vpop.f32.mrb[0].mxu0
        %v1581 = vadd.f32 %v1406, %v1580
        %v1582 = vpop.f32.mrb[0].mxu0
        %1583 = vmatprep.mubr.bf16.mxu0 0
        %1584 = vmatmul.mubr.bf16.gmra.mrb[0].mxu0 %v1431
        %v1585 = vpop.f32.mrb[0].mxu0
        %v1586 = vadd.f32 %v1406, %v1585
        %v1587 = vpop.f32.mrb[0].mxu0
        %v1588 = vpop.f32.mrb[0].mxu0
        %v1589 = vadd.f32 %v1406, %v1588
        %v1590 = vpop.f32.mrb[0].mxu0
        %1591 = vmatprep.mubr.bf16.mxu0 0
        %1592 = vmatmul.mubr.bf16.gmra.mrb[0].mxu0 %v1434
        %v1593 = vpop.f32.mrb[0].mxu0
        %v1594 = vadd.f32 %v1406, %v1593
        %v1595 = vpop.f32.mrb[0].mxu0
        %v1596 = vpop.f32.mrb[0].mxu0
        %v1597 = vadd.f32 %v1406, %v1596
        %v1598 = vpop.f32.mrb[0].mxu0
        %1599 = vmatprep.mubr.bf16.mxu0 0
        %1600 = vmatmul.mubr.bf16.gmra.mrb[0].mxu0 %v1437
        %v1601 = vpop.f32.mrb[0].mxu0
        %v1602 = vadd.f32 %v1406, %v1601
        %v1603 = vpop.f32.mrb[0].mxu0
        %v1604 = vpop.f32.mrb[0].mxu0
        %v1605 = vadd.f32 %v1406, %v1604
        %v1606 = vpop.f32.mrb[0].mxu0
        %1607 = vmatprep.mubr.bf16.mxu0 0
        %1608 = vmatmul.mubr.bf16.gmra.mrb[0].mxu0 %v1440
        %v1609 = vpop.f32.mrb[0].mxu0
        %v1610 = vadd.f32 %v1406, %v1609
        %v1611 = vpop.f32.mrb[0].mxu0
        %v1612 = vpop.f32.mrb[0].mxu0
        %v1613 = vadd.f32 %v1406, %v1612
        %v1614 = vpop.f32.mrb[0].mxu0
        %1615 = vmatprep.mubr.bf16.mxu0 0
        %1616 = vmatmul.mubr.bf16.gmra.mrb[0].mxu0 %v1443
        %v1617 = vpop.f32.mrb[0].mxu0
        %v1618 = vadd.f32 %v1406, %v1617
        %v1619 = vpop.f32.mrb[0].mxu0
        %v1620 = vpop.f32.mrb[0].mxu0
        %v1621 = vadd.f32 %v1406, %v1620
        %v1622 = vpop.f32.mrb[0].mxu0
        %1623 = vmatprep.mubr.bf16.mxu0 0
        %1624 = vmatmul.mubr.bf16.gmra.mrb[0].mxu0 %v1446
        %v1625 = vpop.f32.mrb[0].mxu0
        %v1626 = vadd.f32 %v1406, %v1625
        %v1627 = vpop.f32.mrb[0].mxu0
        %v1628 = vpop.f32.mrb[0].mxu0
        %v1629 = vadd.f32 %v1406, %v1628
        %v1630 = vpop.f32.mrb[0].mxu0
        %1631 = vmatprep.mubr.bf16.mxu0 0
        %1632 = vmatmul.mubr.bf16.gmra.mrb[0].mxu0 %v1449
        %v1633 = vpop.f32.mrb[0].mxu0
        %v1634 = vadd.f32 %v1406, %v1633
        %v1635 = vpop.f32.mrb[0].mxu0
        %v1636 = vpop.f32.mrb[0].mxu0
        %v1637 = vadd.f32 %v1406, %v1636
        %v1638 = vpop.f32.mrb[0].mxu0
        %1639 = vmatprep.mubr.bf16.mxu0 0
        %1640 = vmatmul.mubr.bf16.gmra.mrb[0].mxu0 %v1452
        %v1641 = vpop.f32.mrb[0].mxu0
        %v1642 = vadd.f32 %v1406, %v1641
        %v1643 = vpop.f32.mrb[0].mxu0
        %v1644 = vpop.f32.mrb[0].mxu0
        %v1645 = vadd.f32 %v1406, %v1644
        %v1646 = vpop.f32.mrb[0].mxu0
        %1647 = vmatprep.mubr.bf16.mxu0 0
        %1648 = vmatmul.mubr.bf16.gmra.mrb[0].mxu0 %v1455
        %v1649 = vpop.f32.mrb[0].mxu0
        %v1650 = vadd.f32 %v1406, %v1649
        %v1651 = vpop.f32.mrb[0].mxu0
        %v1652 = vpop.f32.mrb[0].mxu0
        %v1653 = vadd.f32 %v1406, %v1652
        %v1654 = vpop.f32.mrb[0].mxu0
        %1655 = vmatprep.mubr.bf16.mxu0 0
        %1656 = vmatmul.mubr.bf16.gmra.mrb[0].mxu0 %v1458
        %v1657 = vpop.f32.mrb[0].mxu0
        %v1658 = vadd.f32 %v1406, %v1657
        %v1659 = vpop.f32.mrb[0].mxu0
        %v1660 = vpop.f32.mrb[0].mxu0
        %v1661 = vadd.f32 %v1406, %v1660
        %v1662 = vpop.f32.mrb[0].mxu0
        %1663 = vmatprep.mubr.bf16.mxu0 0
        %1664 = vmatmul.mubr.bf16.gmra.mrb[0].mxu0 %v1461
        %v1665 = vpop.f32.mrb[0].mxu0
        %v1666 = vadd.f32 %v1406, %v1665
        %v1667 = vpop.f32.mrb[0].mxu0
        %v1668 = vpop.f32.mrb[0].mxu0
        %v1669 = vadd.f32 %v1406, %v1668
        %v1670 = vpop.f32.mrb[0].mxu0
        %1671 = vmatprep.mubr.bf16.mxu0 0
        %1672 = vmatmul.mubr.bf16.gmra.mrb[0].mxu0 %v1464
        %v1673 = vpop.f32.mrb[0].mxu0
        %v1674 = vadd.f32 %v1406, %v1673
        %v1675 = vpop.f32.mrb[0].mxu0
        %v1676 = vpop.f32.mrb[0].mxu0
        %v1677 = vadd.f32 %v1406, %v1676
        %v1678 = vpop.f32.mrb[0].mxu0
        %1679 = vmatprep.mubr.bf16.mxu0 0
        %1680 = vmatmul.mubr.bf16.gmra.mrb[0].mxu0 %v1467
        %v1681 = vpop.f32.mrb[0].mxu0
        %v1682 = vadd.f32 %v1406, %v1681
        %v1683 = vpop.f32.mrb[0].mxu0
        %v1684 = vpop.f32.mrb[0].mxu0
        %v1685 = vadd.f32 %v1406, %v1684
        %v1686 = vpop.f32.mrb[0].mxu0
        %1687 = vmatprep.mubr.bf16.mxu0 0
        %1688 = vmatmul.mubr.bf16.gmra.mrb[0].mxu0 %v1470
        %v1689 = vpop.f32.mrb[0].mxu0
        %v1690 = vadd.f32 %v1406, %v1689
        %v1691 = vpop.f32.mrb[0].mxu0
        %v1692 = vpop.f32.mrb[0].mxu0
        %v1693 = vadd.f32 %v1406, %v1692
        %v1694 = vpop.f32.mrb[0].mxu0
        %1695 = vmatprep.mubr.bf16.mxu0 0
        %1696 = vmatmul.mubr.bf16.gmra.mrb[0].mxu0 %v1473
        %v1697 = vpop.f32.mrb[0].mxu0
        %v1698 = vadd.f32 %v1406, %v1697
        %v1699 = vpop.f32.mrb[0].mxu0
        %v1700 = vpop.f32.mrb[0].mxu0
        %v1701 = vadd.f32 %v1406, %v1700
        %v1702 = vpop.f32.mrb[0].mxu0
        %1703 = vmatprep.mubr.bf16.mxu0 0
        %1704 = vmatmul.mubr.bf16.gmra.mrb[0].mxu0 %v1476
        %v1705 = vpop.f32.mrb[0].mxu0
        %v1706 = vadd.f32 %v1406, %v1705
        %v1707 = vpop.f32.mrb[0].mxu0
        %v1708 = vpop.f32.mrb[0].mxu0
        %v1709 = vadd.f32 %v1406, %v1708
        %v1710 = vpop.f32.mrb[0].mxu0
        %1711 = vmatprep.mubr.bf16.mxu0 0
        %1712 = vmatmul.mubr.bf16.gmra.mrb[0].mxu0 %v1479
        %v1713 = vpop.f32.mrb[0].mxu0
        %v1714 = vadd.f32 %v1406, %v1713
        %v1715 = vpop.f32.mrb[0].mxu0
        %v1716 = vpop.f32.mrb[0].mxu0
        %v1717 = vadd.f32 %v1406, %v1716
        %v1718 = vpop.f32.mrb[0].mxu0
        %1719 = vmatprep.mubr.bf16.mxu0 0
        %1720 = vmatmul.mubr.bf16.gmra.mrb[0].mxu0 %v1482
        %v1721 = vpop.f32.mrb[0].mxu0
        %v1722 = vadd.f32 %v1406, %v1721
        %v1723 = vpop.f32.mrb[0].mxu0
        %v1724 = vpop.f32.mrb[0].mxu0
        %v1725 = vadd.f32 %v1406, %v1724
        %v1726 = vpop.f32.mrb[0].mxu0
        %1727 = vmatprep.mubr.bf16.mxu0 0
        %1728 = vmatmul.mubr.bf16.gmra.mrb[0].mxu0 %v1485
        %v1729 = vpop.f32.mrb[0].mxu0
        %v1730 = vadd.f32 %v1406, %v1729
        %v1731 = vpop.f32.mrb[0].mxu0
        %v1732 = vpop.f32.mrb[0].mxu0
        %v1733 = vadd.f32 %v1406, %v1732
        %v1734 = vpop.f32.mrb[0].mxu0
        %1735 = vmatprep.mubr.bf16.mxu0 0
        %1736 = vmatmul.mubr.bf16.gmra.mrb[0].mxu0 %v1488
        %v1737 = vpop.f32.mrb[0].mxu0
        %v1738 = vadd.f32 %v1406, %v1737
        %v1739 = vpop.f32.mrb[0].mxu0
        %v1740 = vpop.f32.mrb[0].mxu0
        %v1741 = vadd.f32 %v1406, %v1740
        %v1742 = vpop.f32.mrb[0].mxu0
        %1743 = vmatprep.mubr.bf16.mxu0 0
        %1744 = vmatmul.mubr.bf16.gmra.mrb[0].mxu0 %v1491
        %v1745 = vpop.f32.mrb[0].mxu0
        %v1746 = vadd.f32 %v1406, %v1745
        %v1747 = vpop.f32.mrb[0].mxu0
        %v1748 = vpop.f32.mrb[0].mxu0
        %v1749 = vadd.f32 %v1406, %v1748
        %v1750 = vpop.f32.mrb[0].mxu0
        %1751 = vmatprep.mubr.bf16.mxu0 0
        %1752 = vmatmul.mubr.bf16.gmra.mrb[0].mxu0 %v1494
        %v1753 = vpop.f32.mrb[0].mxu0
        %v1754 = vadd.f32 %v1406, %v1753
        %v1755 = vpop.f32.mrb[0].mxu0
        %v1756 = vpop.f32.mrb[0].mxu0
        %v1757 = vadd.f32 %v1406, %v1756
        %v1758 = vpop.f32.mrb[0].mxu0
        %1759 = vmatprep.mubr.bf16.mxu0 0
        %1760 = vmatmul.mubr.bf16.gmra.mrb[0].mxu0 %v1497
        %v1761 = vpop.f32.mrb[0].mxu0
        %v1762 = vadd.f32 %v1406, %v1761
        %v1763 = vpop.f32.mrb[0].mxu0
        %v1764 = vpop.f32.mrb[0].mxu0
        %v1765 = vadd.f32 %v1406, %v1764
        %v1766 = vpop.f32.mrb[0].mxu0
        %1767 = vmatprep.mubr.bf16.mxu0 0
        %1768 = vmatmul.mubr.bf16.gmra.mrb[0].mxu0 %v1500
        %v1769 = vpop.f32.mrb[0].mxu0
        %v1770 = vadd.f32 %v1406, %v1769
        %v1771 = vpop.f32.mrb[0].mxu0
        %v1772 = vpop.f32.mrb[0].mxu0
        %v1773 = vadd.f32 %v1406, %v1772
        %v1774 = vpop.f32.mrb[0].mxu0
        %1775 = vmatprep.mubr.bf16.mxu0 0
        %1776 = vmatmul.mubr.bf16.gmra.mrb[0].mxu0 %v1503
        %v1777 = vpop.f32.mrb[0].mxu0
        %v1778 = vadd.f32 %v1406, %v1777
        %v1779 = vpop.f32.mrb[0].mxu0
        %v1780 = vpop.f32.mrb[0].mxu0
        %v1781 = vadd.f32 %v1406, %v1780
        %v1782 = vpop.f32.mrb[0].mxu0
        %1783 = vmatprep.mubr.bf16.mxu0 0
        %1784 = vmatmul.mubr.bf16.gmra.mrb[0].mxu0 %v1506
        %v1785 = vpop.f32.mrb[0].mxu0
        %v1786 = vadd.f32 %v1406, %v1785
        %v1787 = vpop.f32.mrb[0].mxu0
        %v1788 = vpop.f32.mrb[0].mxu0
        %v1789 = vadd.f32 %v1406, %v1788
        %v1790 = vpop.f32.mrb[0].mxu0
        %1791 = vmatprep.mubr.bf16.mxu0 0
        %1792 = vmatmul.mubr.bf16.gmra.mrb[0].mxu0 %v1509
        %v1793 = vpop.f32.mrb[0].mxu0
        %v1794 = vadd.f32 %v1406, %v1793
        %v1795 = vpop.f32.mrb[0].mxu0
        %v1796 = vpop.f32.mrb[0].mxu0
        %v1797 = vadd.f32 %v1406, %v1796
        %v1798 = vpop.f32.mrb[0].mxu0
        %1799 = vdwg.mxu0
        %v1800 = vmax.f32 %v1546, 0.0
        %v1801 = vmax.f32 %v1549, 0.0
        %v1802 = vmax.f32 %v1554, 0.0
        %v1803 = vmax.f32 %v1557, 0.0
        %v1804 = vmax.f32 %v1562, 0.0
        %v1805 = vmax.f32 %v1565, 0.0
        %v1806 = vmax.f32 %v1570, 0.0
        %v1807 = vmax.f32 %v1573, 0.0
        %v1808 = vmax.f32 %v1578, 0.0
        %v1809 = vmax.f32 %v1581, 0.0
        %v1810 = vmax.f32 %v1586, 0.0
        %v1811 = vmax.f32 %v1589, 0.0
        %v1812 = vmax.f32 %v1594, 0.0
        %v1813 = vmax.f32 %v1597, 0.0
        %v1814 = vmax.f32 %v1602, 0.0
        %v1815 = vmax.f32 %v1605, 0.0
        %v1816 = vmax.f32 %v1610, 0.0
        %v1817 = vmax.f32 %v1613, 0.0
        %v1818 = vmax.f32 %v1618, 0.0
        %v1819 = vmax.f32 %v1621, 0.0
        %v1820 = vmax.f32 %v1626, 0.0
        %v1821 = vmax.f32 %v1629, 0.0
        %v1822 = vmax.f32 %v1634, 0.0
        %v1823 = vmax.f32 %v1637, 0.0
        %v1824 = vmax.f32 %v1642, 0.0
        %v1825 = vmax.f32 %v1645, 0.0
        %v1826 = vmax.f32 %v1650, 0.0
        %v1827 = vmax.f32 %v1653, 0.0
        %v1828 = vmax.f32 %v1658, 0.0
        %v1829 = vmax.f32 %v1661, 0.0
        %v1830 = vmax.f32 %v1666, 0.0
        %v1831 = vmax.f32 %v1669, 0.0
        %v1832 = vmax.f32 %v1674, 0.0
        %v1833 = vmax.f32 %v1677, 0.0
        %v1834 = vmax.f32 %v1682, 0.0
        %v1835 = vmax.f32 %v1685, 0.0
        %v1836 = vmax.f32 %v1690, 0.0
        %v1837 = vmax.f32 %v1693, 0.0
        %v1838 = vmax.f32 %v1698, 0.0
        %v1839 = vmax.f32 %v1701, 0.0
        %v1840 = vmax.f32 %v1706, 0.0
        %v1841 = vmax.f32 %v1709, 0.0
        %v1842 = vmax.f32 %v1714, 0.0
        %v1843 = vmax.f32 %v1717, 0.0
        %v1844 = vmax.f32 %v1722, 0.0
        %v1845 = vmax.f32 %v1725, 0.0
        %v1846 = vmax.f32 %v1730, 0.0
        %v1847 = vmax.f32 %v1733, 0.0
        %v1848 = vmax.f32 %v1738, 0.0
        %v1849 = vmax.f32 %v1741, 0.0
        %v1850 = vmax.f32 %v1746, 0.0
        %v1851 = vmax.f32 %v1749, 0.0
        %v1852 = vmax.f32 %v1754, 0.0
        %v1853 = vmax.f32 %v1757, 0.0
        %v1854 = vmax.f32 %v1762, 0.0
        %v1855 = vmax.f32 %v1765, 0.0
        %v1856 = vmax.f32 %v1770, 0.0
        %v1857 = vmax.f32 %v1773, 0.0
        %v1858 = vmax.f32 %v1778, 0.0
        %v1859 = vmax.f32 %v1781, 0.0
        %v1860 = vmax.f32 %v1786, 0.0
        %v1861 = vmax.f32 %v1789, 0.0
        %v1862 = vmax.f32 %v1794, 0.0
        %v1863 = vmax.f32 %v1797, 0.0
        %v1864 = vpack.c.bf16 %v1801, %v1800
        %v1865 = vpack.c.bf16 %v1803, %v1802
        %v1866 = vpack.c.bf16 %v1805, %v1804
        %v1867 = vpack.c.bf16 %v1807, %v1806
        %v1868 = vpack.c.bf16 %v1809, %v1808
        %v1869 = vpack.c.bf16 %v1811, %v1810
        %v1870 = vpack.c.bf16 %v1813, %v1812
        %v1871 = vpack.c.bf16 %v1815, %v1814
        %v1872 = vpack.c.bf16 %v1817, %v1816
        %v1873 = vpack.c.bf16 %v1819, %v1818
        %v1874 = vpack.c.bf16 %v1821, %v1820
        %v1875 = vpack.c.bf16 %v1823, %v1822
        %v1876 = vpack.c.bf16 %v1825, %v1824
        %v1877 = vpack.c.bf16 %v1827, %v1826
        %v1878 = vpack.c.bf16 %v1829, %v1828
        %v1879 = vpack.c.bf16 %v1831, %v1830
        %v1880 = vpack.c.bf16 %v1833, %v1832
        %v1881 = vpack.c.bf16 %v1835, %v1834
        %v1882 = vpack.c.bf16 %v1837, %v1836
        %v1883 = vpack.c.bf16 %v1839, %v1838
        %v1884 = vpack.c.bf16 %v1841, %v1840
        %v1885 = vpack.c.bf16 %v1843, %v1842
        %v1886 = vpack.c.bf16 %v1845, %v1844
        %v1887 = vpack.c.bf16 %v1847, %v1846
        %v1888 = vpack.c.bf16 %v1849, %v1848
        %v1889 = vpack.c.bf16 %v1851, %v1850
        %v1890 = vpack.c.bf16 %v1853, %v1852
        %v1891 = vpack.c.bf16 %v1855, %v1854
        %v1892 = vpack.c.bf16 %v1857, %v1856
        %v1893 = vpack.c.bf16 %v1859, %v1858
        %v1894 = vpack.c.bf16 %v1861, %v1860
        %v1895 = vpack.c.bf16 %v1863, %v1862
        %v1896 = vld [vmem:[%s5] sm:$0xf]
        %v1897 = vld [vmem:[%s5 + $0x4] sm:$0xf]
        %v1898 = vld [vmem:[%s5 + $0x8] sm:$0xf]
        %v1899 = vld [vmem:[%s5 + $0xc] sm:$0xf]
        %v1900 = vld [vmem:[%s5 + $0x10] sm:$0xf]
        %v1901 = vld [vmem:[%s5 + $0x14] sm:$0xf]
        %v1902 = vld [vmem:[%s5 + $0x18] sm:$0xf]
        %v1903 = vld [vmem:[%s5 + $0x1c] sm:$0xf]
        %v1904 = vld [vmem:[%s6] sm:$0x1]
        %v1906 = vlaneseq
        %v1907 = vshrl.u32 %v1906, 7
        %v1908 = vsub.s32 0, %v1907
        %v1909 = vrot.slane %v1904, %v1908
        %v1919 = vunpack.c.l.b16 %v1896
        %v1920 = vunpack.c.l.b16 %v1897
        %v1921 = vunpack.c.l.b16 %v1898
        %v1922 = vunpack.c.l.b16 %v1899
        %v1923 = vunpack.c.l.b16 %v1900
        %v1924 = vunpack.c.l.b16 %v1901
        %v1925 = vunpack.c.l.b16 %v1902
        %v1926 = vunpack.c.l.b16 %v1903
        %v1927 = vpack.c.b16 %v1920, %v1919
        %v1928 = vpack.c.b16 %v1922, %v1921
        %v1929 = vpack.c.b16 %v1924, %v1923
        %v1930 = vpack.c.b16 %v1926, %v1925
        %vm1935 = vcmask 523264
        %v1937 = vsel %vm1935, %v1864, 0
        %v1940 = vsel %vm1935, %v1865, 0
        %v1943 = vsel %vm1935, %v1866, 0
        %v1946 = vsel %vm1935, %v1867, 0
        %v1949 = vsel %vm1935, %v1868, 0
        %v1952 = vsel %vm1935, %v1869, 0
        %v1955 = vsel %vm1935, %v1870, 0
        %v1958 = vsel %vm1935, %v1871, 0
        %v1961 = vsel %vm1935, %v1872, 0
        %v1964 = vsel %vm1935, %v1873, 0
        %v1967 = vsel %vm1935, %v1874, 0
        %v1970 = vsel %vm1935, %v1875, 0
        %v1973 = vsel %vm1935, %v1876, 0
        %v1976 = vsel %vm1935, %v1877, 0
        %v1979 = vsel %vm1935, %v1878, 0
        %v1982 = vsel %vm1935, %v1879, 0
        %v1985 = vsel %vm1935, %v1880, 0
        %v1988 = vsel %vm1935, %v1881, 0
        %v1991 = vsel %vm1935, %v1882, 0
        %v1994 = vsel %vm1935, %v1883, 0
        %v1997 = vsel %vm1935, %v1884, 0
        %v2000 = vsel %vm1935, %v1885, 0
        %v2003 = vsel %vm1935, %v1886, 0
        %v2006 = vsel %vm1935, %v1887, 0
        %v2009 = vsel %vm1935, %v1888, 0
        %v2012 = vsel %vm1935, %v1889, 0
        %v2015 = vsel %vm1935, %v1890, 0
        %v2018 = vsel %vm1935, %v1891, 0
        %v2021 = vsel %vm1935, %v1892, 0
        %v2024 = vsel %vm1935, %v1893, 0
        %v2027 = vsel %vm1935, %v1894, 0
        %v2030 = vsel %vm1935, %v1895, 0
        %2032 = vmatprep.subr.bf16.mxu0 0
        %2033 = vmatpush1.bf16.msra.mxu0 %v1927
        %2034 = vmatprep.subr.bf16.mxu0 0
        %2035 = vmatpush1.bf16.msra.mxu0 %v1928
        %2036 = vmatprep.subr.bf16.mxu0 0
        %2037 = vmatpush1.bf16.msra.mxu0 %v1929
        %2038 = vmatprep.subr.bf16.mxu0 0
        %2039 = vmatpush1.bf16.msra.mxu0 %v1930
        %2040 = vmatprep.subr.bf16.mxu0 0
        %2041 = vmatpush1.bf16.msra.mxu0 0
        %2042 = vmatprep.subr.bf16.mxu0 0
        %2043 = vmatpush1.bf16.msra.mxu0 0
        %2044 = vmatprep.subr.bf16.mxu0 0
        %2045 = vmatpush1.bf16.msra.mxu0 0
        %2046 = vmatprep.subr.bf16.mxu0 0
        %2047 = vmatpush1.bf16.msra.mxu0 0
        %2048 = vmatprep.subr.bf16.mxu0 0
        %2049 = vmatpush1.bf16.msra.mxu0 0
        %2050 = vmatprep.subr.bf16.mxu0 0
        %2051 = vmatpush1.bf16.msra.mxu0 0
        %2052 = vmatprep.subr.bf16.mxu0 0
        %2053 = vmatpush1.bf16.msra.mxu0 0
        %2054 = vmatprep.subr.bf16.mxu0 0
        %2055 = vmatpush1.bf16.msra.mxu0 0
        %2056 = vmatprep.subr.bf16.mxu0 0
        %2057 = vmatpush1.bf16.msra.mxu0 0
        %2058 = vmatprep.subr.bf16.mxu0 0
        %2059 = vmatpush1.bf16.msra.mxu0 0
        %2060 = vmatprep.subr.bf16.mxu0 0
        %2061 = vmatpush1.bf16.msra.mxu0 0
        %2062 = vmatprep.subr.bf16.mxu0 0
        %2063 = vmatpush1.bf16.msra.mxu0 0
        %2064 = vmatprep.mubr.bf16.mxu0 0
        %2065 = vmatmul.mubr.bf16.gmra.mrb[0].mxu0 %v1937
        %v2066 = vpop.f32.mrb[0].mxu0
        %v2067 = vadd.f32 %v1909, %v2066
        %v2068 = vpop.f32.mrb[0].mxu0
        %v2069 = vpop.f32.mrb[0].mxu0
        %v2070 = vadd.f32 %v1909, %v2069
        %v2071 = vpop.f32.mrb[0].mxu0
        %2072 = vmatprep.mubr.bf16.mxu0 0
        %2073 = vmatmul.mubr.bf16.gmra.mrb[0].mxu0 %v1940
        %v2074 = vpop.f32.mrb[0].mxu0
        %v2075 = vadd.f32 %v1909, %v2074
        %v2076 = vpop.f32.mrb[0].mxu0
        %v2077 = vpop.f32.mrb[0].mxu0
        %v2078 = vadd.f32 %v1909, %v2077
        %v2079 = vpop.f32.mrb[0].mxu0
        %2080 = vmatprep.mubr.bf16.mxu0 0
        %2081 = vmatmul.mubr.bf16.gmra.mrb[0].mxu0 %v1943
        %v2082 = vpop.f32.mrb[0].mxu0
        %v2083 = vadd.f32 %v1909, %v2082
        %v2084 = vpop.f32.mrb[0].mxu0
        %v2085 = vpop.f32.mrb[0].mxu0
        %v2086 = vadd.f32 %v1909, %v2085
        %v2087 = vpop.f32.mrb[0].mxu0
        %2088 = vmatprep.mubr.bf16.mxu0 0
        %2089 = vmatmul.mubr.bf16.gmra.mrb[0].mxu0 %v1946
        %v2090 = vpop.f32.mrb[0].mxu0
        %v2091 = vadd.f32 %v1909, %v2090
        %v2092 = vpop.f32.mrb[0].mxu0
        %v2093 = vpop.f32.mrb[0].mxu0
        %v2094 = vadd.f32 %v1909, %v2093
        %v2095 = vpop.f32.mrb[0].mxu0
        %2096 = vmatprep.mubr.bf16.mxu0 0
        %2097 = vmatmul.mubr.bf16.gmra.mrb[0].mxu0 %v1949
        %v2098 = vpop.f32.mrb[0].mxu0
        %v2099 = vadd.f32 %v1909, %v2098
        %v2100 = vpop.f32.mrb[0].mxu0
        %v2101 = vpop.f32.mrb[0].mxu0
        %v2102 = vadd.f32 %v1909, %v2101
        %v2103 = vpop.f32.mrb[0].mxu0
        %2104 = vmatprep.mubr.bf16.mxu0 0
        %2105 = vmatmul.mubr.bf16.gmra.mrb[0].mxu0 %v1952
        %v2106 = vpop.f32.mrb[0].mxu0
        %v2107 = vadd.f32 %v1909, %v2106
        %v2108 = vpop.f32.mrb[0].mxu0
        %v2109 = vpop.f32.mrb[0].mxu0
        %v2110 = vadd.f32 %v1909, %v2109
        %v2111 = vpop.f32.mrb[0].mxu0
        %2112 = vmatprep.mubr.bf16.mxu0 0
        %2113 = vmatmul.mubr.bf16.gmra.mrb[0].mxu0 %v1955
        %v2114 = vpop.f32.mrb[0].mxu0
        %v2115 = vadd.f32 %v1909, %v2114
        %v2116 = vpop.f32.mrb[0].mxu0
        %v2117 = vpop.f32.mrb[0].mxu0
        %v2118 = vadd.f32 %v1909, %v2117
        %v2119 = vpop.f32.mrb[0].mxu0
        %2120 = vmatprep.mubr.bf16.mxu0 0
        %2121 = vmatmul.mubr.bf16.gmra.mrb[0].mxu0 %v1958
        %v2122 = vpop.f32.mrb[0].mxu0
        %v2123 = vadd.f32 %v1909, %v2122
        %v2124 = vpop.f32.mrb[0].mxu0
        %v2125 = vpop.f32.mrb[0].mxu0
        %v2126 = vadd.f32 %v1909, %v2125
        %v2127 = vpop.f32.mrb[0].mxu0
        %2128 = vmatprep.mubr.bf16.mxu0 0
        %2129 = vmatmul.mubr.bf16.gmra.mrb[0].mxu0 %v1961
        %v2130 = vpop.f32.mrb[0].mxu0
        %v2131 = vadd.f32 %v1909, %v2130
        %v2132 = vpop.f32.mrb[0].mxu0
        %v2133 = vpop.f32.mrb[0].mxu0
        %v2134 = vadd.f32 %v1909, %v2133
        %v2135 = vpop.f32.mrb[0].mxu0
        %2136 = vmatprep.mubr.bf16.mxu0 0
        %2137 = vmatmul.mubr.bf16.gmra.mrb[0].mxu0 %v1964
        %v2138 = vpop.f32.mrb[0].mxu0
        %v2139 = vadd.f32 %v1909, %v2138
        %v2140 = vpop.f32.mrb[0].mxu0
        %v2141 = vpop.f32.mrb[0].mxu0
        %v2142 = vadd.f32 %v1909, %v2141
        %v2143 = vpop.f32.mrb[0].mxu0
        %2144 = vmatprep.mubr.bf16.mxu0 0
        %2145 = vmatmul.mubr.bf16.gmra.mrb[0].mxu0 %v1967
        %v2146 = vpop.f32.mrb[0].mxu0
        %v2147 = vadd.f32 %v1909, %v2146
        %v2148 = vpop.f32.mrb[0].mxu0
        %v2149 = vpop.f32.mrb[0].mxu0
        %v2150 = vadd.f32 %v1909, %v2149
        %v2151 = vpop.f32.mrb[0].mxu0
        %2152 = vmatprep.mubr.bf16.mxu0 0
        %2153 = vmatmul.mubr.bf16.gmra.mrb[0].mxu0 %v1970
        %v2154 = vpop.f32.mrb[0].mxu0
        %v2155 = vadd.f32 %v1909, %v2154
        %v2156 = vpop.f32.mrb[0].mxu0
        %v2157 = vpop.f32.mrb[0].mxu0
        %v2158 = vadd.f32 %v1909, %v2157
        %v2159 = vpop.f32.mrb[0].mxu0
        %2160 = vmatprep.mubr.bf16.mxu0 0
        %2161 = vmatmul.mubr.bf16.gmra.mrb[0].mxu0 %v1973
        %v2162 = vpop.f32.mrb[0].mxu0
        %v2163 = vadd.f32 %v1909, %v2162
        %v2164 = vpop.f32.mrb[0].mxu0
        %v2165 = vpop.f32.mrb[0].mxu0
        %v2166 = vadd.f32 %v1909, %v2165
        %v2167 = vpop.f32.mrb[0].mxu0
        %2168 = vmatprep.mubr.bf16.mxu0 0
        %2169 = vmatmul.mubr.bf16.gmra.mrb[0].mxu0 %v1976
        %v2170 = vpop.f32.mrb[0].mxu0
        %v2171 = vadd.f32 %v1909, %v2170
        %v2172 = vpop.f32.mrb[0].mxu0
        %v2173 = vpop.f32.mrb[0].mxu0
        %v2174 = vadd.f32 %v1909, %v2173
        %v2175 = vpop.f32.mrb[0].mxu0
        %2176 = vmatprep.mubr.bf16.mxu0 0
        %2177 = vmatmul.mubr.bf16.gmra.mrb[0].mxu0 %v1979
        %v2178 = vpop.f32.mrb[0].mxu0
        %v2179 = vadd.f32 %v1909, %v2178
        %v2180 = vpop.f32.mrb[0].mxu0
        %v2181 = vpop.f32.mrb[0].mxu0
        %v2182 = vadd.f32 %v1909, %v2181
        %v2183 = vpop.f32.mrb[0].mxu0
        %2184 = vmatprep.mubr.bf16.mxu0 0
        %2185 = vmatmul.mubr.bf16.gmra.mrb[0].mxu0 %v1982
        %v2186 = vpop.f32.mrb[0].mxu0
        %v2187 = vadd.f32 %v1909, %v2186
        %v2188 = vpop.f32.mrb[0].mxu0
        %v2189 = vpop.f32.mrb[0].mxu0
        %v2190 = vadd.f32 %v1909, %v2189
        %v2191 = vpop.f32.mrb[0].mxu0
        %2192 = vmatprep.mubr.bf16.mxu0 0
        %2193 = vmatmul.mubr.bf16.gmra.mrb[0].mxu0 %v1985
        %v2194 = vpop.f32.mrb[0].mxu0
        %v2195 = vadd.f32 %v1909, %v2194
        %v2196 = vpop.f32.mrb[0].mxu0
        %v2197 = vpop.f32.mrb[0].mxu0
        %v2198 = vadd.f32 %v1909, %v2197
        %v2199 = vpop.f32.mrb[0].mxu0
        %2200 = vmatprep.mubr.bf16.mxu0 0
        %2201 = vmatmul.mubr.bf16.gmra.mrb[0].mxu0 %v1988
        %v2202 = vpop.f32.mrb[0].mxu0
        %v2203 = vadd.f32 %v1909, %v2202
        %v2204 = vpop.f32.mrb[0].mxu0
        %v2205 = vpop.f32.mrb[0].mxu0
        %v2206 = vadd.f32 %v1909, %v2205
        %v2207 = vpop.f32.mrb[0].mxu0
        %2208 = vmatprep.mubr.bf16.mxu0 0
        %2209 = vmatmul.mubr.bf16.gmra.mrb[0].mxu0 %v1991
        %v2210 = vpop.f32.mrb[0].mxu0
        %v2211 = vadd.f32 %v1909, %v2210
        %v2212 = vpop.f32.mrb[0].mxu0
        %v2213 = vpop.f32.mrb[0].mxu0
        %v2214 = vadd.f32 %v1909, %v2213
        %v2215 = vpop.f32.mrb[0].mxu0
        %2216 = vmatprep.mubr.bf16.mxu0 0
        %2217 = vmatmul.mubr.bf16.gmra.mrb[0].mxu0 %v1994
        %v2218 = vpop.f32.mrb[0].mxu0
        %v2219 = vadd.f32 %v1909, %v2218
        %v2220 = vpop.f32.mrb[0].mxu0
        %v2221 = vpop.f32.mrb[0].mxu0
        %v2222 = vadd.f32 %v1909, %v2221
        %v2223 = vpop.f32.mrb[0].mxu0
        %2224 = vmatprep.mubr.bf16.mxu0 0
        %2225 = vmatmul.mubr.bf16.gmra.mrb[0].mxu0 %v1997
        %v2226 = vpop.f32.mrb[0].mxu0
        %v2227 = vadd.f32 %v1909, %v2226
        %v2228 = vpop.f32.mrb[0].mxu0
        %v2229 = vpop.f32.mrb[0].mxu0
        %v2230 = vadd.f32 %v1909, %v2229
        %v2231 = vpop.f32.mrb[0].mxu0
        %2232 = vmatprep.mubr.bf16.mxu0 0
        %2233 = vmatmul.mubr.bf16.gmra.mrb[0].mxu0 %v2000
        %v2234 = vpop.f32.mrb[0].mxu0
        %v2235 = vadd.f32 %v1909, %v2234
        %v2236 = vpop.f32.mrb[0].mxu0
        %v2237 = vpop.f32.mrb[0].mxu0
        %v2238 = vadd.f32 %v1909, %v2237
        %v2239 = vpop.f32.mrb[0].mxu0
        %2240 = vmatprep.mubr.bf16.mxu0 0
        %2241 = vmatmul.mubr.bf16.gmra.mrb[0].mxu0 %v2003
        %v2242 = vpop.f32.mrb[0].mxu0
        %v2243 = vadd.f32 %v1909, %v2242
        %v2244 = vpop.f32.mrb[0].mxu0
        %v2245 = vpop.f32.mrb[0].mxu0
        %v2246 = vadd.f32 %v1909, %v2245
        %v2247 = vpop.f32.mrb[0].mxu0
        %2248 = vmatprep.mubr.bf16.mxu0 0
        %2249 = vmatmul.mubr.bf16.gmra.mrb[0].mxu0 %v2006
        %v2250 = vpop.f32.mrb[0].mxu0
        %v2251 = vadd.f32 %v1909, %v2250
        %v2252 = vpop.f32.mrb[0].mxu0
        %v2253 = vpop.f32.mrb[0].mxu0
        %v2254 = vadd.f32 %v1909, %v2253
        %v2255 = vpop.f32.mrb[0].mxu0
        %2256 = vmatprep.mubr.bf16.mxu0 0
        %2257 = vmatmul.mubr.bf16.gmra.mrb[0].mxu0 %v2009
        %v2258 = vpop.f32.mrb[0].mxu0
        %v2259 = vadd.f32 %v1909, %v2258
        %v2260 = vpop.f32.mrb[0].mxu0
        %v2261 = vpop.f32.mrb[0].mxu0
        %v2262 = vadd.f32 %v1909, %v2261
        %v2263 = vpop.f32.mrb[0].mxu0
        %2264 = vmatprep.mubr.bf16.mxu0 0
        %2265 = vmatmul.mubr.bf16.gmra.mrb[0].mxu0 %v2012
        %v2266 = vpop.f32.mrb[0].mxu0
        %v2267 = vadd.f32 %v1909, %v2266
        %v2268 = vpop.f32.mrb[0].mxu0
        %v2269 = vpop.f32.mrb[0].mxu0
        %v2270 = vadd.f32 %v1909, %v2269
        %v2271 = vpop.f32.mrb[0].mxu0
        %2272 = vmatprep.mubr.bf16.mxu0 0
        %2273 = vmatmul.mubr.bf16.gmra.mrb[0].mxu0 %v2015
        %v2274 = vpop.f32.mrb[0].mxu0
        %v2275 = vadd.f32 %v1909, %v2274
        %v2276 = vpop.f32.mrb[0].mxu0
        %v2277 = vpop.f32.mrb[0].mxu0
        %v2278 = vadd.f32 %v1909, %v2277
        %v2279 = vpop.f32.mrb[0].mxu0
        %2280 = vmatprep.mubr.bf16.mxu0 0
        %2281 = vmatmul.mubr.bf16.gmra.mrb[0].mxu0 %v2018
        %v2282 = vpop.f32.mrb[0].mxu0
        %v2283 = vadd.f32 %v1909, %v2282
        %v2284 = vpop.f32.mrb[0].mxu0
        %v2285 = vpop.f32.mrb[0].mxu0
        %v2286 = vadd.f32 %v1909, %v2285
        %v2287 = vpop.f32.mrb[0].mxu0
        %2288 = vmatprep.mubr.bf16.mxu0 0
        %2289 = vmatmul.mubr.bf16.gmra.mrb[0].mxu0 %v2021
        %v2290 = vpop.f32.mrb[0].mxu0
        %v2291 = vadd.f32 %v1909, %v2290
        %v2292 = vpop.f32.mrb[0].mxu0
        %v2293 = vpop.f32.mrb[0].mxu0
        %v2294 = vadd.f32 %v1909, %v2293
        %v2295 = vpop.f32.mrb[0].mxu0
        %2296 = vmatprep.mubr.bf16.mxu0 0
        %2297 = vmatmul.mubr.bf16.gmra.mrb[0].mxu0 %v2024
        %v2298 = vpop.f32.mrb[0].mxu0
        %v2299 = vadd.f32 %v1909, %v2298
        %v2300 = vpop.f32.mrb[0].mxu0
        %v2301 = vpop.f32.mrb[0].mxu0
        %v2302 = vadd.f32 %v1909, %v2301
        %v2303 = vpop.f32.mrb[0].mxu0
        %2304 = vmatprep.mubr.bf16.mxu0 0
        %2305 = vmatmul.mubr.bf16.gmra.mrb[0].mxu0 %v2027
        %v2306 = vpop.f32.mrb[0].mxu0
        %v2307 = vadd.f32 %v1909, %v2306
        %v2308 = vpop.f32.mrb[0].mxu0
        %v2309 = vpop.f32.mrb[0].mxu0
        %v2310 = vadd.f32 %v1909, %v2309
        %v2311 = vpop.f32.mrb[0].mxu0
        %2312 = vmatprep.mubr.bf16.mxu0 0
        %2313 = vmatmul.mubr.bf16.gmra.mrb[0].mxu0 %v2030
        %v2314 = vpop.f32.mrb[0].mxu0
        %v2315 = vadd.f32 %v1909, %v2314
        %v2316 = vpop.f32.mrb[0].mxu0
        %v2317 = vpop.f32.mrb[0].mxu0
        %v2318 = vadd.f32 %v1909, %v2317
        %v2319 = vpop.f32.mrb[0].mxu0
        %2320 = vdwg.mxu0
        %v2321 = vmax.f32 %v2067, 0.0
        %v2322 = vmax.f32 %v2070, 0.0
        %v2323 = vmax.f32 %v2075, 0.0
        %v2324 = vmax.f32 %v2078, 0.0
        %v2325 = vmax.f32 %v2083, 0.0
        %v2326 = vmax.f32 %v2086, 0.0
        %v2327 = vmax.f32 %v2091, 0.0
        %v2328 = vmax.f32 %v2094, 0.0
        %v2329 = vmax.f32 %v2099, 0.0
        %v2330 = vmax.f32 %v2102, 0.0
        %v2331 = vmax.f32 %v2107, 0.0
        %v2332 = vmax.f32 %v2110, 0.0
        %v2333 = vmax.f32 %v2115, 0.0
        %v2334 = vmax.f32 %v2118, 0.0
        %v2335 = vmax.f32 %v2123, 0.0
        %v2336 = vmax.f32 %v2126, 0.0
        %v2337 = vmax.f32 %v2131, 0.0
        %v2338 = vmax.f32 %v2134, 0.0
        %v2339 = vmax.f32 %v2139, 0.0
        %v2340 = vmax.f32 %v2142, 0.0
        %v2341 = vmax.f32 %v2147, 0.0
        %v2342 = vmax.f32 %v2150, 0.0
        %v2343 = vmax.f32 %v2155, 0.0
        %v2344 = vmax.f32 %v2158, 0.0
        %v2345 = vmax.f32 %v2163, 0.0
        %v2346 = vmax.f32 %v2166, 0.0
        %v2347 = vmax.f32 %v2171, 0.0
        %v2348 = vmax.f32 %v2174, 0.0
        %v2349 = vmax.f32 %v2179, 0.0
        %v2350 = vmax.f32 %v2182, 0.0
        %v2351 = vmax.f32 %v2187, 0.0
        %v2352 = vmax.f32 %v2190, 0.0
        %v2353 = vmax.f32 %v2195, 0.0
        %v2354 = vmax.f32 %v2198, 0.0
        %v2355 = vmax.f32 %v2203, 0.0
        %v2356 = vmax.f32 %v2206, 0.0
        %v2357 = vmax.f32 %v2211, 0.0
        %v2358 = vmax.f32 %v2214, 0.0
        %v2359 = vmax.f32 %v2219, 0.0
        %v2360 = vmax.f32 %v2222, 0.0
        %v2361 = vmax.f32 %v2227, 0.0
        %v2362 = vmax.f32 %v2230, 0.0
        %v2363 = vmax.f32 %v2235, 0.0
        %v2364 = vmax.f32 %v2238, 0.0
        %v2365 = vmax.f32 %v2243, 0.0
        %v2366 = vmax.f32 %v2246, 0.0
        %v2367 = vmax.f32 %v2251, 0.0
        %v2368 = vmax.f32 %v2254, 0.0
        %v2369 = vmax.f32 %v2259, 0.0
        %v2370 = vmax.f32 %v2262, 0.0
        %v2371 = vmax.f32 %v2267, 0.0
        %v2372 = vmax.f32 %v2270, 0.0
        %v2373 = vmax.f32 %v2275, 0.0
        %v2374 = vmax.f32 %v2278, 0.0
        %v2375 = vmax.f32 %v2283, 0.0
        %v2376 = vmax.f32 %v2286, 0.0
        %v2377 = vmax.f32 %v2291, 0.0
        %v2378 = vmax.f32 %v2294, 0.0
        %v2379 = vmax.f32 %v2299, 0.0
        %v2380 = vmax.f32 %v2302, 0.0
        %v2381 = vmax.f32 %v2307, 0.0
        %v2382 = vmax.f32 %v2310, 0.0
        %v2383 = vmax.f32 %v2315, 0.0
        %v2384 = vmax.f32 %v2318, 0.0
        %v2385 = vpack.c.bf16 %v2322, %v2321
        %v2386 = vpack.c.bf16 %v2324, %v2323
        %v2387 = vpack.c.bf16 %v2326, %v2325
        %v2388 = vpack.c.bf16 %v2328, %v2327
        %v2389 = vpack.c.bf16 %v2330, %v2329
        %v2390 = vpack.c.bf16 %v2332, %v2331
        %v2391 = vpack.c.bf16 %v2334, %v2333
        %v2392 = vpack.c.bf16 %v2336, %v2335
        %v2393 = vpack.c.bf16 %v2338, %v2337
        %v2394 = vpack.c.bf16 %v2340, %v2339
        %v2395 = vpack.c.bf16 %v2342, %v2341
        %v2396 = vpack.c.bf16 %v2344, %v2343
        %v2397 = vpack.c.bf16 %v2346, %v2345
        %v2398 = vpack.c.bf16 %v2348, %v2347
        %v2399 = vpack.c.bf16 %v2350, %v2349
        %v2400 = vpack.c.bf16 %v2352, %v2351
        %v2401 = vpack.c.bf16 %v2354, %v2353
        %v2402 = vpack.c.bf16 %v2356, %v2355
        %v2403 = vpack.c.bf16 %v2358, %v2357
        %v2404 = vpack.c.bf16 %v2360, %v2359
        %v2405 = vpack.c.bf16 %v2362, %v2361
        %v2406 = vpack.c.bf16 %v2364, %v2363
        %v2407 = vpack.c.bf16 %v2366, %v2365
        %v2408 = vpack.c.bf16 %v2368, %v2367
        %v2409 = vpack.c.bf16 %v2370, %v2369
        %v2410 = vpack.c.bf16 %v2372, %v2371
        %v2411 = vpack.c.bf16 %v2374, %v2373
        %v2412 = vpack.c.bf16 %v2376, %v2375
        %v2413 = vpack.c.bf16 %v2378, %v2377
        %v2414 = vpack.c.bf16 %v2380, %v2379
        %v2415 = vpack.c.bf16 %v2382, %v2381
        %v2416 = vpack.c.bf16 %v2384, %v2383
        %v2417 = vld [vmem:[%s7] sm:$0xf]
        %v2418 = vld [vmem:[%s7 + $0x4] sm:$0xf]
        %v2419 = vld [vmem:[%s7 + $0x8] sm:$0xf]
        %v2420 = vld [vmem:[%s7 + $0xc] sm:$0xf]
        %v2421 = vld [vmem:[%s7 + $0x10] sm:$0xf]
        %v2422 = vld [vmem:[%s7 + $0x14] sm:$0xf]
        %v2423 = vld [vmem:[%s7 + $0x18] sm:$0xf]
        %v2424 = vld [vmem:[%s7 + $0x1c] sm:$0xf]
        %v2425 = vld [vmem:[%s8] sm:$0x1]
        %v2427 = vlaneseq
        %v2428 = vshrl.u32 %v2427, 7
        %v2429 = vsub.s32 0, %v2428
        %v2430 = vrot.slane %v2425, %v2429
        %v2440 = vunpack.c.l.b16 %v2417
        %v2441 = vunpack.c.l.b16 %v2418
        %v2442 = vunpack.c.l.b16 %v2419
        %v2443 = vunpack.c.l.b16 %v2420
        %v2444 = vunpack.c.l.b16 %v2421
        %v2445 = vunpack.c.l.b16 %v2422
        %v2446 = vunpack.c.l.b16 %v2423
        %v2447 = vunpack.c.l.b16 %v2424
        %v2448 = vpack.c.b16 %v2441, %v2440
        %v2449 = vpack.c.b16 %v2443, %v2442
        %v2450 = vpack.c.b16 %v2445, %v2444
        %v2451 = vpack.c.b16 %v2447, %v2446
        %v2457 = vsel %vm1935, %v2385, 0
        %v2460 = vsel %vm1935, %v2386, 0
        %v2463 = vsel %vm1935, %v2387, 0
        %v2466 = vsel %vm1935, %v2388, 0
        %v2469 = vsel %vm1935, %v2389, 0
        %v2472 = vsel %vm1935, %v2390, 0
        %v2475 = vsel %vm1935, %v2391, 0
        %v2478 = vsel %vm1935, %v2392, 0
        %v2481 = vsel %vm1935, %v2393, 0
        %v2484 = vsel %vm1935, %v2394, 0
        %v2487 = vsel %vm1935, %v2395, 0
        %v2490 = vsel %vm1935, %v2396, 0
        %v2493 = vsel %vm1935, %v2397, 0
        %v2496 = vsel %vm1935, %v2398, 0
        %v2499 = vsel %vm1935, %v2399, 0
        %v2502 = vsel %vm1935, %v2400, 0
        %v2505 = vsel %vm1935, %v2401, 0
        %v2508 = vsel %vm1935, %v2402, 0
        %v2511 = vsel %vm1935, %v2403, 0
        %v2514 = vsel %vm1935, %v2404, 0
        %v2517 = vsel %vm1935, %v2405, 0
        %v2520 = vsel %vm1935, %v2406, 0
        %v2523 = vsel %vm1935, %v2407, 0
        %v2526 = vsel %vm1935, %v2408, 0
        %v2529 = vsel %vm1935, %v2409, 0
        %v2532 = vsel %vm1935, %v2410, 0
        %v2535 = vsel %vm1935, %v2411, 0
        %v2538 = vsel %vm1935, %v2412, 0
        %v2541 = vsel %vm1935, %v2413, 0
        %v2544 = vsel %vm1935, %v2414, 0
        %v2547 = vsel %vm1935, %v2415, 0
        %v2550 = vsel %vm1935, %v2416, 0
        %2552 = vmatprep.subr.bf16.mxu0 0
        %2553 = vmatpush1.bf16.msra.mxu0 %v2448
        %2554 = vmatprep.subr.bf16.mxu0 0
        %2555 = vmatpush1.bf16.msra.mxu0 %v2449
        %2556 = vmatprep.subr.bf16.mxu0 0
        %2557 = vmatpush1.bf16.msra.mxu0 %v2450
        %2558 = vmatprep.subr.bf16.mxu0 0
        %2559 = vmatpush1.bf16.msra.mxu0 %v2451
        %2560 = vmatprep.subr.bf16.mxu0 0
        %2561 = vmatpush1.bf16.msra.mxu0 0
        %2562 = vmatprep.subr.bf16.mxu0 0
        %2563 = vmatpush1.bf16.msra.mxu0 0
        %2564 = vmatprep.subr.bf16.mxu0 0
        %2565 = vmatpush1.bf16.msra.mxu0 0
        %2566 = vmatprep.subr.bf16.mxu0 0
        %2567 = vmatpush1.bf16.msra.mxu0 0
        %2568 = vmatprep.subr.bf16.mxu0 0
        %2569 = vmatpush1.bf16.msra.mxu0 0
        %2570 = vmatprep.subr.bf16.mxu0 0
        %2571 = vmatpush1.bf16.msra.mxu0 0
        %2572 = vmatprep.subr.bf16.mxu0 0
        %2573 = vmatpush1.bf16.msra.mxu0 0
        %2574 = vmatprep.subr.bf16.mxu0 0
        %2575 = vmatpush1.bf16.msra.mxu0 0
        %2576 = vmatprep.subr.bf16.mxu0 0
        %2577 = vmatpush1.bf16.msra.mxu0 0
        %2578 = vmatprep.subr.bf16.mxu0 0
        %2579 = vmatpush1.bf16.msra.mxu0 0
        %2580 = vmatprep.subr.bf16.mxu0 0
        %2581 = vmatpush1.bf16.msra.mxu0 0
        %2582 = vmatprep.subr.bf16.mxu0 0
        %2583 = vmatpush1.bf16.msra.mxu0 0
        %2584 = vmatprep.mubr.bf16.mxu0 0
        %2585 = vmatmul.mubr.bf16.gmra.mrb[0].mxu0 %v2457
        %v2586 = vpop.f32.mrb[0].mxu0
        %v2587 = vadd.f32 %v2430, %v2586
        %v2588 = vpop.f32.mrb[0].mxu0
        %v2589 = vpop.f32.mrb[0].mxu0
        %v2590 = vadd.f32 %v2430, %v2589
        %v2591 = vpop.f32.mrb[0].mxu0
        %2592 = vmatprep.mubr.bf16.mxu0 0
        %2593 = vmatmul.mubr.bf16.gmra.mrb[0].mxu0 %v2460
        %v2594 = vpop.f32.mrb[0].mxu0
        %v2595 = vadd.f32 %v2430, %v2594
        %v2596 = vpop.f32.mrb[0].mxu0
        %v2597 = vpop.f32.mrb[0].mxu0
        %v2598 = vadd.f32 %v2430, %v2597
        %v2599 = vpop.f32.mrb[0].mxu0
        %2600 = vmatprep.mubr.bf16.mxu0 0
        %2601 = vmatmul.mubr.bf16.gmra.mrb[0].mxu0 %v2463
        %v2602 = vpop.f32.mrb[0].mxu0
        %v2603 = vadd.f32 %v2430, %v2602
        %v2604 = vpop.f32.mrb[0].mxu0
        %v2605 = vpop.f32.mrb[0].mxu0
        %v2606 = vadd.f32 %v2430, %v2605
        %v2607 = vpop.f32.mrb[0].mxu0
        %2608 = vmatprep.mubr.bf16.mxu0 0
        %2609 = vmatmul.mubr.bf16.gmra.mrb[0].mxu0 %v2466
        %v2610 = vpop.f32.mrb[0].mxu0
        %v2611 = vadd.f32 %v2430, %v2610
        %v2612 = vpop.f32.mrb[0].mxu0
        %v2613 = vpop.f32.mrb[0].mxu0
        %v2614 = vadd.f32 %v2430, %v2613
        %v2615 = vpop.f32.mrb[0].mxu0
        %2616 = vmatprep.mubr.bf16.mxu0 0
        %2617 = vmatmul.mubr.bf16.gmra.mrb[0].mxu0 %v2469
        %v2618 = vpop.f32.mrb[0].mxu0
        %v2619 = vadd.f32 %v2430, %v2618
        %v2620 = vpop.f32.mrb[0].mxu0
        %v2621 = vpop.f32.mrb[0].mxu0
        %v2622 = vadd.f32 %v2430, %v2621
        %v2623 = vpop.f32.mrb[0].mxu0
        %2624 = vmatprep.mubr.bf16.mxu0 0
        %2625 = vmatmul.mubr.bf16.gmra.mrb[0].mxu0 %v2472
        %v2626 = vpop.f32.mrb[0].mxu0
        %v2627 = vadd.f32 %v2430, %v2626
        %v2628 = vpop.f32.mrb[0].mxu0
        %v2629 = vpop.f32.mrb[0].mxu0
        %v2630 = vadd.f32 %v2430, %v2629
        %v2631 = vpop.f32.mrb[0].mxu0
        %2632 = vmatprep.mubr.bf16.mxu0 0
        %2633 = vmatmul.mubr.bf16.gmra.mrb[0].mxu0 %v2475
        %v2634 = vpop.f32.mrb[0].mxu0
        %v2635 = vadd.f32 %v2430, %v2634
        %v2636 = vpop.f32.mrb[0].mxu0
        %v2637 = vpop.f32.mrb[0].mxu0
        %v2638 = vadd.f32 %v2430, %v2637
        %v2639 = vpop.f32.mrb[0].mxu0
        %2640 = vmatprep.mubr.bf16.mxu0 0
        %2641 = vmatmul.mubr.bf16.gmra.mrb[0].mxu0 %v2478
        %v2642 = vpop.f32.mrb[0].mxu0
        %v2643 = vadd.f32 %v2430, %v2642
        %v2644 = vpop.f32.mrb[0].mxu0
        %v2645 = vpop.f32.mrb[0].mxu0
        %v2646 = vadd.f32 %v2430, %v2645
        %v2647 = vpop.f32.mrb[0].mxu0
        %2648 = vmatprep.mubr.bf16.mxu0 0
        %2649 = vmatmul.mubr.bf16.gmra.mrb[0].mxu0 %v2481
        %v2650 = vpop.f32.mrb[0].mxu0
        %v2651 = vadd.f32 %v2430, %v2650
        %v2652 = vpop.f32.mrb[0].mxu0
        %v2653 = vpop.f32.mrb[0].mxu0
        %v2654 = vadd.f32 %v2430, %v2653
        %v2655 = vpop.f32.mrb[0].mxu0
        %2656 = vmatprep.mubr.bf16.mxu0 0
        %2657 = vmatmul.mubr.bf16.gmra.mrb[0].mxu0 %v2484
        %v2658 = vpop.f32.mrb[0].mxu0
        %v2659 = vadd.f32 %v2430, %v2658
        %v2660 = vpop.f32.mrb[0].mxu0
        %v2661 = vpop.f32.mrb[0].mxu0
        %v2662 = vadd.f32 %v2430, %v2661
        %v2663 = vpop.f32.mrb[0].mxu0
        %2664 = vmatprep.mubr.bf16.mxu0 0
        %2665 = vmatmul.mubr.bf16.gmra.mrb[0].mxu0 %v2487
        %v2666 = vpop.f32.mrb[0].mxu0
        %v2667 = vadd.f32 %v2430, %v2666
        %v2668 = vpop.f32.mrb[0].mxu0
        %v2669 = vpop.f32.mrb[0].mxu0
        %v2670 = vadd.f32 %v2430, %v2669
        %v2671 = vpop.f32.mrb[0].mxu0
        %2672 = vmatprep.mubr.bf16.mxu0 0
        %2673 = vmatmul.mubr.bf16.gmra.mrb[0].mxu0 %v2490
        %v2674 = vpop.f32.mrb[0].mxu0
        %v2675 = vadd.f32 %v2430, %v2674
        %v2676 = vpop.f32.mrb[0].mxu0
        %v2677 = vpop.f32.mrb[0].mxu0
        %v2678 = vadd.f32 %v2430, %v2677
        %v2679 = vpop.f32.mrb[0].mxu0
        %2680 = vmatprep.mubr.bf16.mxu0 0
        %2681 = vmatmul.mubr.bf16.gmra.mrb[0].mxu0 %v2493
        %v2682 = vpop.f32.mrb[0].mxu0
        %v2683 = vadd.f32 %v2430, %v2682
        %v2684 = vpop.f32.mrb[0].mxu0
        %v2685 = vpop.f32.mrb[0].mxu0
        %v2686 = vadd.f32 %v2430, %v2685
        %v2687 = vpop.f32.mrb[0].mxu0
        %2688 = vmatprep.mubr.bf16.mxu0 0
        %2689 = vmatmul.mubr.bf16.gmra.mrb[0].mxu0 %v2496
        %v2690 = vpop.f32.mrb[0].mxu0
        %v2691 = vadd.f32 %v2430, %v2690
        %v2692 = vpop.f32.mrb[0].mxu0
        %v2693 = vpop.f32.mrb[0].mxu0
        %v2694 = vadd.f32 %v2430, %v2693
        %v2695 = vpop.f32.mrb[0].mxu0
        %2696 = vmatprep.mubr.bf16.mxu0 0
        %2697 = vmatmul.mubr.bf16.gmra.mrb[0].mxu0 %v2499
        %v2698 = vpop.f32.mrb[0].mxu0
        %v2699 = vadd.f32 %v2430, %v2698
        %v2700 = vpop.f32.mrb[0].mxu0
        %v2701 = vpop.f32.mrb[0].mxu0
        %v2702 = vadd.f32 %v2430, %v2701
        %v2703 = vpop.f32.mrb[0].mxu0
        %2704 = vmatprep.mubr.bf16.mxu0 0
        %2705 = vmatmul.mubr.bf16.gmra.mrb[0].mxu0 %v2502
        %v2706 = vpop.f32.mrb[0].mxu0
        %v2707 = vadd.f32 %v2430, %v2706
        %v2708 = vpop.f32.mrb[0].mxu0
        %v2709 = vpop.f32.mrb[0].mxu0
        %v2710 = vadd.f32 %v2430, %v2709
        %v2711 = vpop.f32.mrb[0].mxu0
        %2712 = vmatprep.mubr.bf16.mxu0 0
        %2713 = vmatmul.mubr.bf16.gmra.mrb[0].mxu0 %v2505
        %v2714 = vpop.f32.mrb[0].mxu0
        %v2715 = vadd.f32 %v2430, %v2714
        %v2716 = vpop.f32.mrb[0].mxu0
        %v2717 = vpop.f32.mrb[0].mxu0
        %v2718 = vadd.f32 %v2430, %v2717
        %v2719 = vpop.f32.mrb[0].mxu0
        %2720 = vmatprep.mubr.bf16.mxu0 0
        %2721 = vmatmul.mubr.bf16.gmra.mrb[0].mxu0 %v2508
        %v2722 = vpop.f32.mrb[0].mxu0
        %v2723 = vadd.f32 %v2430, %v2722
        %v2724 = vpop.f32.mrb[0].mxu0
        %v2725 = vpop.f32.mrb[0].mxu0
        %v2726 = vadd.f32 %v2430, %v2725
        %v2727 = vpop.f32.mrb[0].mxu0
        %2728 = vmatprep.mubr.bf16.mxu0 0
        %2729 = vmatmul.mubr.bf16.gmra.mrb[0].mxu0 %v2511
        %v2730 = vpop.f32.mrb[0].mxu0
        %v2731 = vadd.f32 %v2430, %v2730
        %v2732 = vpop.f32.mrb[0].mxu0
        %v2733 = vpop.f32.mrb[0].mxu0
        %v2734 = vadd.f32 %v2430, %v2733
        %v2735 = vpop.f32.mrb[0].mxu0
        %2736 = vmatprep.mubr.bf16.mxu0 0
        %2737 = vmatmul.mubr.bf16.gmra.mrb[0].mxu0 %v2514
        %v2738 = vpop.f32.mrb[0].mxu0
        %v2739 = vadd.f32 %v2430, %v2738
        %v2740 = vpop.f32.mrb[0].mxu0
        %v2741 = vpop.f32.mrb[0].mxu0
        %v2742 = vadd.f32 %v2430, %v2741
        %v2743 = vpop.f32.mrb[0].mxu0
        %2744 = vmatprep.mubr.bf16.mxu0 0
        %2745 = vmatmul.mubr.bf16.gmra.mrb[0].mxu0 %v2517
        %v2746 = vpop.f32.mrb[0].mxu0
        %v2747 = vadd.f32 %v2430, %v2746
        %v2748 = vpop.f32.mrb[0].mxu0
        %v2749 = vpop.f32.mrb[0].mxu0
        %v2750 = vadd.f32 %v2430, %v2749
        %v2751 = vpop.f32.mrb[0].mxu0
        %2752 = vmatprep.mubr.bf16.mxu0 0
        %2753 = vmatmul.mubr.bf16.gmra.mrb[0].mxu0 %v2520
        %v2754 = vpop.f32.mrb[0].mxu0
        %v2755 = vadd.f32 %v2430, %v2754
        %v2756 = vpop.f32.mrb[0].mxu0
        %v2757 = vpop.f32.mrb[0].mxu0
        %v2758 = vadd.f32 %v2430, %v2757
        %v2759 = vpop.f32.mrb[0].mxu0
        %2760 = vmatprep.mubr.bf16.mxu0 0
        %2761 = vmatmul.mubr.bf16.gmra.mrb[0].mxu0 %v2523
        %v2762 = vpop.f32.mrb[0].mxu0
        %v2763 = vadd.f32 %v2430, %v2762
        %v2764 = vpop.f32.mrb[0].mxu0
        %v2765 = vpop.f32.mrb[0].mxu0
        %v2766 = vadd.f32 %v2430, %v2765
        %v2767 = vpop.f32.mrb[0].mxu0
        %2768 = vmatprep.mubr.bf16.mxu0 0
        %2769 = vmatmul.mubr.bf16.gmra.mrb[0].mxu0 %v2526
        %v2770 = vpop.f32.mrb[0].mxu0
        %v2771 = vadd.f32 %v2430, %v2770
        %v2772 = vpop.f32.mrb[0].mxu0
        %v2773 = vpop.f32.mrb[0].mxu0
        %v2774 = vadd.f32 %v2430, %v2773
        %v2775 = vpop.f32.mrb[0].mxu0
        %2776 = vmatprep.mubr.bf16.mxu0 0
        %2777 = vmatmul.mubr.bf16.gmra.mrb[0].mxu0 %v2529
        %v2778 = vpop.f32.mrb[0].mxu0
        %v2779 = vadd.f32 %v2430, %v2778
        %v2780 = vpop.f32.mrb[0].mxu0
        %v2781 = vpop.f32.mrb[0].mxu0
        %v2782 = vadd.f32 %v2430, %v2781
        %v2783 = vpop.f32.mrb[0].mxu0
        %2784 = vmatprep.mubr.bf16.mxu0 0
        %2785 = vmatmul.mubr.bf16.gmra.mrb[0].mxu0 %v2532
        %v2786 = vpop.f32.mrb[0].mxu0
        %v2787 = vadd.f32 %v2430, %v2786
        %v2788 = vpop.f32.mrb[0].mxu0
        %v2789 = vpop.f32.mrb[0].mxu0
        %v2790 = vadd.f32 %v2430, %v2789
        %v2791 = vpop.f32.mrb[0].mxu0
        %2792 = vmatprep.mubr.bf16.mxu0 0
        %2793 = vmatmul.mubr.bf16.gmra.mrb[0].mxu0 %v2535
        %v2794 = vpop.f32.mrb[0].mxu0
        %v2795 = vadd.f32 %v2430, %v2794
        %v2796 = vpop.f32.mrb[0].mxu0
        %v2797 = vpop.f32.mrb[0].mxu0
        %v2798 = vadd.f32 %v2430, %v2797
        %v2799 = vpop.f32.mrb[0].mxu0
        %2800 = vmatprep.mubr.bf16.mxu0 0
        %2801 = vmatmul.mubr.bf16.gmra.mrb[0].mxu0 %v2538
        %v2802 = vpop.f32.mrb[0].mxu0
        %v2803 = vadd.f32 %v2430, %v2802
        %v2804 = vpop.f32.mrb[0].mxu0
        %v2805 = vpop.f32.mrb[0].mxu0
        %v2806 = vadd.f32 %v2430, %v2805
        %v2807 = vpop.f32.mrb[0].mxu0
        %2808 = vmatprep.mubr.bf16.mxu0 0
        %2809 = vmatmul.mubr.bf16.gmra.mrb[0].mxu0 %v2541
        %v2810 = vpop.f32.mrb[0].mxu0
        %v2811 = vadd.f32 %v2430, %v2810
        %v2812 = vpop.f32.mrb[0].mxu0
        %v2813 = vpop.f32.mrb[0].mxu0
        %v2814 = vadd.f32 %v2430, %v2813
        %v2815 = vpop.f32.mrb[0].mxu0
        %2816 = vmatprep.mubr.bf16.mxu0 0
        %2817 = vmatmul.mubr.bf16.gmra.mrb[0].mxu0 %v2544
        %v2818 = vpop.f32.mrb[0].mxu0
        %v2819 = vadd.f32 %v2430, %v2818
        %v2820 = vpop.f32.mrb[0].mxu0
        %v2821 = vpop.f32.mrb[0].mxu0
        %v2822 = vadd.f32 %v2430, %v2821
        %v2823 = vpop.f32.mrb[0].mxu0
        %2824 = vmatprep.mubr.bf16.mxu0 0
        %2825 = vmatmul.mubr.bf16.gmra.mrb[0].mxu0 %v2547
        %v2826 = vpop.f32.mrb[0].mxu0
        %v2827 = vadd.f32 %v2430, %v2826
        %v2828 = vpop.f32.mrb[0].mxu0
        %v2829 = vpop.f32.mrb[0].mxu0
        %v2830 = vadd.f32 %v2430, %v2829
        %v2831 = vpop.f32.mrb[0].mxu0
        %2832 = vmatprep.mubr.bf16.mxu0 0
        %2833 = vmatmul.mubr.bf16.gmra.mrb[0].mxu0 %v2550
        %v2834 = vpop.f32.mrb[0].mxu0
        %v2835 = vadd.f32 %v2430, %v2834
        %v2836 = vpop.f32.mrb[0].mxu0
        %v2837 = vpop.f32.mrb[0].mxu0
        %v2838 = vadd.f32 %v2430, %v2837
        %v2839 = vpop.f32.mrb[0].mxu0
        %2840 = vdwg.mxu0
        %v2841 = vpack.c.bf16 %v2590, %v2587
        %v2842 = vpack.c.bf16 %v2598, %v2595
        %v2843 = vpack.c.bf16 %v2606, %v2603
        %v2844 = vpack.c.bf16 %v2614, %v2611
        %v2845 = vpack.c.bf16 %v2622, %v2619
        %v2846 = vpack.c.bf16 %v2630, %v2627
        %v2847 = vpack.c.bf16 %v2638, %v2635
        %v2848 = vpack.c.bf16 %v2646, %v2643
        %v2849 = vpack.c.bf16 %v2654, %v2651
        %v2850 = vpack.c.bf16 %v2662, %v2659
        %v2851 = vpack.c.bf16 %v2670, %v2667
        %v2852 = vpack.c.bf16 %v2678, %v2675
        %v2853 = vpack.c.bf16 %v2686, %v2683
        %v2854 = vpack.c.bf16 %v2694, %v2691
        %v2855 = vpack.c.bf16 %v2702, %v2699
        %v2856 = vpack.c.bf16 %v2710, %v2707
        %v2857 = vpack.c.bf16 %v2718, %v2715
        %v2858 = vpack.c.bf16 %v2726, %v2723
        %v2859 = vpack.c.bf16 %v2734, %v2731
        %v2860 = vpack.c.bf16 %v2742, %v2739
        %v2861 = vpack.c.bf16 %v2750, %v2747
        %v2862 = vpack.c.bf16 %v2758, %v2755
        %v2863 = vpack.c.bf16 %v2766, %v2763
        %v2864 = vpack.c.bf16 %v2774, %v2771
        %v2865 = vpack.c.bf16 %v2782, %v2779
        %v2866 = vpack.c.bf16 %v2790, %v2787
        %v2867 = vpack.c.bf16 %v2798, %v2795
        %v2868 = vpack.c.bf16 %v2806, %v2803
        %v2869 = vpack.c.bf16 %v2814, %v2811
        %v2870 = vpack.c.bf16 %v2822, %v2819
        %v2871 = vpack.c.bf16 %v2830, %v2827
        %v2872 = vpack.c.bf16 %v2838, %v2835
        %v2905 = vunpack.c.l.b16 %v2841
        %v2906 = vunpack.c.h.b16 %v2841
        %v2907 = vunpack.c.l.b16 %v2842
        %v2908 = vunpack.c.h.b16 %v2842
        %v2909 = vunpack.c.l.b16 %v2843
        %v2910 = vunpack.c.h.b16 %v2843
        %v2911 = vunpack.c.l.b16 %v2844
        %v2912 = vunpack.c.h.b16 %v2844
        %v2913 = vunpack.c.l.b16 %v2845
        %v2914 = vunpack.c.h.b16 %v2845
        %v2915 = vunpack.c.l.b16 %v2846
        %v2916 = vunpack.c.h.b16 %v2846
        %v2917 = vunpack.c.l.b16 %v2847
        %v2918 = vunpack.c.h.b16 %v2847
        %v2919 = vunpack.c.l.b16 %v2848
        %v2920 = vunpack.c.h.b16 %v2848
        %v2921 = vunpack.c.l.b16 %v2849
        %v2922 = vunpack.c.h.b16 %v2849
        %v2923 = vunpack.c.l.b16 %v2850
        %v2924 = vunpack.c.h.b16 %v2850
        %v2925 = vunpack.c.l.b16 %v2851
        %v2926 = vunpack.c.h.b16 %v2851
        %v2927 = vunpack.c.l.b16 %v2852
        %v2928 = vunpack.c.h.b16 %v2852
        %v2929 = vunpack.c.l.b16 %v2853
        %v2930 = vunpack.c.h.b16 %v2853
        %v2931 = vunpack.c.l.b16 %v2854
        %v2932 = vunpack.c.h.b16 %v2854
        %v2933 = vunpack.c.l.b16 %v2855
        %v2934 = vunpack.c.h.b16 %v2855
        %v2935 = vunpack.c.l.b16 %v2856
        %v2936 = vunpack.c.h.b16 %v2856
        %v2937 = vunpack.c.l.b16 %v2857
        %v2938 = vunpack.c.h.b16 %v2857
        %v2939 = vunpack.c.l.b16 %v2858
        %v2940 = vunpack.c.h.b16 %v2858
        %v2941 = vunpack.c.l.b16 %v2859
        %v2942 = vunpack.c.h.b16 %v2859
        %v2943 = vunpack.c.l.b16 %v2860
        %v2944 = vunpack.c.h.b16 %v2860
        %v2945 = vunpack.c.l.b16 %v2861
        %v2946 = vunpack.c.h.b16 %v2861
        %v2947 = vunpack.c.l.b16 %v2862
        %v2948 = vunpack.c.h.b16 %v2862
        %v2949 = vunpack.c.l.b16 %v2863
        %v2950 = vunpack.c.h.b16 %v2863
        %v2951 = vunpack.c.l.b16 %v2864
        %v2952 = vunpack.c.h.b16 %v2864
        %v2953 = vunpack.c.l.b16 %v2865
        %v2954 = vunpack.c.h.b16 %v2865
        %v2955 = vunpack.c.l.b16 %v2866
        %v2956 = vunpack.c.h.b16 %v2866
        %v2957 = vunpack.c.l.b16 %v2867
        %v2958 = vunpack.c.h.b16 %v2867
        %v2959 = vunpack.c.l.b16 %v2868
        %v2960 = vunpack.c.h.b16 %v2868
        %v2961 = vunpack.c.l.b16 %v2869
        %v2962 = vunpack.c.h.b16 %v2869
        %v2963 = vunpack.c.l.b16 %v2870
        %v2964 = vunpack.c.h.b16 %v2870
        %v2965 = vunpack.c.l.b16 %v2871
        %v2966 = vunpack.c.h.b16 %v2871
        %v2967 = vunpack.c.l.b16 %v2872
        %v2968 = vunpack.c.h.b16 %v2872
        %v2969 = vpack.c.b16 %v2905, %v2905
        %v2970 = vpack.c.b16 %v2906, %v2906
        %v2971 = vpack.c.b16 %v2907, %v2907
        %v2972 = vpack.c.b16 %v2908, %v2908
        %v2973 = vpack.c.b16 %v2909, %v2909
        %v2974 = vpack.c.b16 %v2910, %v2910
        %v2975 = vpack.c.b16 %v2911, %v2911
        %v2976 = vpack.c.b16 %v2912, %v2912
        %v2977 = vpack.c.b16 %v2913, %v2913
        %v2978 = vpack.c.b16 %v2914, %v2914
        %v2979 = vpack.c.b16 %v2915, %v2915
        %v2980 = vpack.c.b16 %v2916, %v2916
        %v2981 = vpack.c.b16 %v2917, %v2917
        %v2982 = vpack.c.b16 %v2918, %v2918
        %v2983 = vpack.c.b16 %v2919, %v2919
        %v2984 = vpack.c.b16 %v2920, %v2920
        %v2985 = vpack.c.b16 %v2921, %v2921
        %v2986 = vpack.c.b16 %v2922, %v2922
        %v2987 = vpack.c.b16 %v2923, %v2923
        %v2988 = vpack.c.b16 %v2924, %v2924
        %v2989 = vpack.c.b16 %v2925, %v2925
        %v2990 = vpack.c.b16 %v2926, %v2926
        %v2991 = vpack.c.b16 %v2927, %v2927
        %v2992 = vpack.c.b16 %v2928, %v2928
        %v2993 = vpack.c.b16 %v2929, %v2929
        %v2994 = vpack.c.b16 %v2930, %v2930
        %v2995 = vpack.c.b16 %v2931, %v2931
        %v2996 = vpack.c.b16 %v2932, %v2932
        %v2997 = vpack.c.b16 %v2933, %v2933
        %v2998 = vpack.c.b16 %v2934, %v2934
        %v2999 = vpack.c.b16 %v2935, %v2935
        %v3000 = vpack.c.b16 %v2936, %v2936
        %v3001 = vpack.c.b16 %v2937, %v2937
        %v3002 = vpack.c.b16 %v2938, %v2938
        %v3003 = vpack.c.b16 %v2939, %v2939
        %v3004 = vpack.c.b16 %v2940, %v2940
        %v3005 = vpack.c.b16 %v2941, %v2941
        %v3006 = vpack.c.b16 %v2942, %v2942
        %v3007 = vpack.c.b16 %v2943, %v2943
        %v3008 = vpack.c.b16 %v2944, %v2944
        %v3009 = vpack.c.b16 %v2945, %v2945
        %v3010 = vpack.c.b16 %v2946, %v2946
        %v3011 = vpack.c.b16 %v2947, %v2947
        %v3012 = vpack.c.b16 %v2948, %v2948
        %v3013 = vpack.c.b16 %v2949, %v2949
        %v3014 = vpack.c.b16 %v2950, %v2950
        %v3015 = vpack.c.b16 %v2951, %v2951
        %v3016 = vpack.c.b16 %v2952, %v2952
        %v3017 = vpack.c.b16 %v2953, %v2953
        %v3018 = vpack.c.b16 %v2954, %v2954
        %v3019 = vpack.c.b16 %v2955, %v2955
        %v3020 = vpack.c.b16 %v2956, %v2956
        %v3021 = vpack.c.b16 %v2957, %v2957
        %v3022 = vpack.c.b16 %v2958, %v2958
        %v3023 = vpack.c.b16 %v2959, %v2959
        %v3024 = vpack.c.b16 %v2960, %v2960
        %v3025 = vpack.c.b16 %v2961, %v2961
        %v3026 = vpack.c.b16 %v2962, %v2962
        %v3027 = vpack.c.b16 %v2963, %v2963
        %v3028 = vpack.c.b16 %v2964, %v2964
        %v3029 = vpack.c.b16 %v2965, %v2965
        %v3030 = vpack.c.b16 %v2966, %v2966
        %v3031 = vpack.c.b16 %v2967, %v2967
        %v3032 = vpack.c.b16 %v2968, %v2968
        %3097 = vst [vmem:[%s326] sm:$0xf] %v2969
        %3098 = vst [vmem:[%s326 + $0x4] sm:$0xf] %v2970
        %3099 = vst [vmem:[%s326 + $0x8] sm:$0xf] %v2971
        %3100 = vst [vmem:[%s326 + $0xc] sm:$0xf] %v2972
        %3101 = vst [vmem:[%s326 + $0x10] sm:$0xf] %v2973
        %3102 = vst [vmem:[%s326 + $0x14] sm:$0xf] %v2974
        %3103 = vst [vmem:[%s326 + $0x18] sm:$0xf] %v2975
        %3104 = vst [vmem:[%s326 + $0x1c] sm:$0xf] %v2976
        %3105 = vst [vmem:[%s326 + $0x20] sm:$0xf] %v2977
        %3106 = vst [vmem:[%s326 + $0x24] sm:$0xf] %v2978
        %3107 = vst [vmem:[%s326 + $0x28] sm:$0xf] %v2979
        %3108 = vst [vmem:[%s326 + $0x2c] sm:$0xf] %v2980
        %3109 = vst [vmem:[%s326 + $0x30] sm:$0xf] %v2981
        %3110 = vst [vmem:[%s326 + $0x34] sm:$0xf] %v2982
        %3111 = vst [vmem:[%s326 + $0x38] sm:$0xf] %v2983
        %3112 = vst [vmem:[%s326 + $0x3c] sm:$0xf] %v2984
        %3113 = vst [vmem:[%s326 + $0x40] sm:$0xf] %v2985
        %3114 = vst [vmem:[%s326 + $0x44] sm:$0xf] %v2986
        %3115 = vst [vmem:[%s326 + $0x48] sm:$0xf] %v2987
        %3116 = vst [vmem:[%s326 + $0x4c] sm:$0xf] %v2988
        %3117 = vst [vmem:[%s326 + $0x50] sm:$0xf] %v2989
        %3118 = vst [vmem:[%s326 + $0x54] sm:$0xf] %v2990
        %3119 = vst [vmem:[%s326 + $0x58] sm:$0xf] %v2991
        %3120 = vst [vmem:[%s326 + $0x5c] sm:$0xf] %v2992
        %3121 = vst [vmem:[%s326 + $0x60] sm:$0xf] %v2993
        %3122 = vst [vmem:[%s326 + $0x64] sm:$0xf] %v2994
        %3123 = vst [vmem:[%s326 + $0x68] sm:$0xf] %v2995
        %3124 = vst [vmem:[%s326 + $0x6c] sm:$0xf] %v2996
        %3125 = vst [vmem:[%s326 + $0x70] sm:$0xf] %v2997
        %3126 = vst [vmem:[%s326 + $0x74] sm:$0xf] %v2998
        %3127 = vst [vmem:[%s326 + $0x78] sm:$0xf] %v2999
        %3128 = vst [vmem:[%s326 + $0x7c] sm:$0xf] %v3000
        %3129 = vst [vmem:[%s326 + $0x80] sm:$0xf] %v3001
        %3130 = vst [vmem:[%s326 + $0x84] sm:$0xf] %v3002
        %3131 = vst [vmem:[%s326 + $0x88] sm:$0xf] %v3003
        %3132 = vst [vmem:[%s326 + $0x8c] sm:$0xf] %v3004
        %3133 = vst [vmem:[%s326 + $0x90] sm:$0xf] %v3005
        %3134 = vst [vmem:[%s326 + $0x94] sm:$0xf] %v3006
        %3135 = vst [vmem:[%s326 + $0x98] sm:$0xf] %v3007
        %3136 = vst [vmem:[%s326 + $0x9c] sm:$0xf] %v3008
        %3137 = vst [vmem:[%s326 + $0xa0] sm:$0xf] %v3009
        %3138 = vst [vmem:[%s326 + $0xa4] sm:$0xf] %v3010
        %3139 = vst [vmem:[%s326 + $0xa8] sm:$0xf] %v3011
        %3140 = vst [vmem:[%s326 + $0xac] sm:$0xf] %v3012
        %3141 = vst [vmem:[%s326 + $0xb0] sm:$0xf] %v3013
        %3142 = vst [vmem:[%s326 + $0xb4] sm:$0xf] %v3014
        %3143 = vst [vmem:[%s326 + $0xb8] sm:$0xf] %v3015
        %3144 = vst [vmem:[%s326 + $0xbc] sm:$0xf] %v3016
        %3145 = vst [vmem:[%s326 + $0xc0] sm:$0xf] %v3017
        %3146 = vst [vmem:[%s326 + $0xc4] sm:$0xf] %v3018
        %3147 = vst [vmem:[%s326 + $0xc8] sm:$0xf] %v3019
        %3148 = vst [vmem:[%s326 + $0xcc] sm:$0xf] %v3020
        %3149 = vst [vmem:[%s326 + $0xd0] sm:$0xf] %v3021
        %3150 = vst [vmem:[%s326 + $0xd4] sm:$0xf] %v3022
        %3151 = vst [vmem:[%s326 + $0xd8] sm:$0xf] %v3023
        %3152 = vst [vmem:[%s326 + $0xdc] sm:$0xf] %v3024
        %3153 = vst [vmem:[%s326 + $0xe0] sm:$0xf] %v3025
        %3154 = vst [vmem:[%s326 + $0xe4] sm:$0xf] %v3026
        %3155 = vst [vmem:[%s326 + $0xe8] sm:$0xf] %v3027
        %3156 = vst [vmem:[%s326 + $0xec] sm:$0xf] %v3028
        %3157 = vst [vmem:[%s326 + $0xf0] sm:$0xf] %v3029
        %3158 = vst [vmem:[%s326 + $0xf4] sm:$0xf] %v3030
        %3159 = vst [vmem:[%s326 + $0xf8] sm:$0xf] %v3031
        %3160 = vst [vmem:[%s326 + $0xfc] sm:$0xf] %v3032
        %s3161 = sand.u32 %s225, 1
        %s3162 = scalar_lea.sflag [#allocation3], %s3161
        %s3163 = sand.u32 %s225, 1
        %s3164 = smul.addr %s3163, 256
        %s3165 = scalar_lea.vmem [#allocation2], %s3164
        // Predicated region
        $region57: #{nim_mlp_forward_padded.1} parent=55 // pred_check
          %p3166 = pneg %p235
        $region58: #{nim_mlp_forward_padded.1} parent=55 // pred_check_branch
          %3168 = sbr.rel (%p3166) target = $region60
        $region59: #{nim_mlp_forward_padded.1} parent=55 // pred_region
          %s3169 = smul.u32 64, %s23
          %s3171 = ssub.s32 4096, 4096
          %3172 = vsyncadd %s3162, %s3171
          %s3173 = smul.addr %s3169, 64
          %s3174 = scalar_lea.hbm %s9, %s3173
          %s3175 = sshll.u32 %s3165, 4
          %s3176 = int_to_ptr.vmem [resolvable:$true] %s3175
          %3181 = dma.vmem_to_hbm [thread:$0]  %s3176, 4096, %s3174, %s3162, 64, 64, 4
        $region60: #{nim_mlp_forward_padded.1} parent=55 // pred_fallthru
          _
      $region56: #{nim_mlp_forward_padded.1} parent=5 // pred_fallthru
        _
      %p3182 = scmp.le.s32.totalorder 2, %s18
      // Predicated region
      $region61: #{nim_mlp_forward_padded.1} parent=5 // pred_check
        %p3183 = pneg %p3182
      $region62: #{nim_mlp_forward_padded.1} parent=5 // pred_check_branch
        %3185 = sbr.rel (%p3183) target = $region64
      $region63: #{nim_mlp_forward_padded.1} parent=5 // pred_region
        %s3186 = ssub.s32 %s18, 2
        // Predicated region
        $region65: #{nim_mlp_forward_padded.1} parent=63 // pred_check
          %p3187 = pneg %p241
        $region66: #{nim_mlp_forward_padded.1} parent=63 // pred_check_branch
          %3189 = sbr.rel (%p3187) target = $region68
        $region67: #{nim_mlp_forward_padded.1} parent=63 // pred_region
          %s3190 = sand.u32 %s226, 1
          %s3191 = scalar_lea.sflag [#allocation3], %s3190
          %s3192 = sand.u32 %s226, 1
          %s3193 = smul.addr %s3192, 256
          %s3194 = scalar_lea.vmem [#allocation2], %s3193
          %3195 = dma.done %s3191, 4096
        $region68: #{nim_mlp_forward_padded.1} parent=63 // pred_fallthru
          _
      $region64: #{nim_mlp_forward_padded.1} parent=5 // pred_fallthru
        _
    $region6: #{nim_mlp_forward_padded.1} parent=1 // loop_footer
      %s22 = sadd.s32 1, %s18
    $region7: #{nim_mlp_forward_padded.1} parent=1 // loop_footer_branch
      %17 = sbr.rel target = $region3
    $region8: #{nim_mlp_forward_padded.1} parent=1 // loop_exit
      _
    %3196 = vsyncpa [#allocation3], 1
    %s3197 = scalar_lea.sflag [#allocation3], 1
    %3198 = vsyncpa %s3197, 1

</llo_original>
